<compile_context>
chip_gen: v7x
topology: tpu7x:2x2x1
jax: 0.10.0
libtpu: 0.0.40
codegen_flags: <defaults>
</compile_context>

<pallas_src>
import math
import numpy as np
import jax
import jax.numpy as jnp
from jax.experimental import pallas as pl
from jax.experimental.pallas import tpu as pltpu

# ----------------------- configuration (small, consistent with the module) ------
B          = 2      # batch
SEQ_LEN    = 8      # configs.seq_len (power of two -> cheap in-kernel mod via AND)
ENC_IN     = 4      # configs.enc_in  (= feat_dim)
MARK_DIM   = 4      # time-feature dim for embed='timeF', freq='h'
D_MODEL    = 32     # configs.d_model
N_HEADS    = 4      # configs.n_heads (head split is mathematically irrelevant here)
D_FF       = 64     # configs.d_ff
E_LAYERS   = 2      # configs.e_layers
MOVING_AVG = 5      # configs.moving_avg (odd)
FACTOR     = 1      # configs.factor
EPS        = 1e-5
TOP_K      = max(1, int(FACTOR * math.log(SEQ_LEN)))   # = 2
# configs.dropout = 0.0 / eval mode => every Dropout is identity.
# configs.activation = 'relu', configs.output_attention = False.

assert SEQ_LEN & (SEQ_LEN - 1) == 0, "in-kernel circular indexing uses & (L-1)"
assert TOP_K <= SEQ_LEN


# ----------------------------- fused Pallas kernel -------------------------------
def fused_encoder_kernel(x_ref, we_ref, wqkv_ref, bqkv_ref, wout_ref, bout_ref,
                         w1_ref, w2_ref, sel_ref, mavg_ref, gamma_ref, beta_ref,
                         out_ref):
    L, C, D = SEQ_LEN, ENC_IN, D_MODEL
    x = x_ref[0]                                   # [L, C+M]
    xe = x[:, :C]                                  # [L, C]
    xm = x[:, C:]                                  # [L, M]

    # Hoisted iotas (shared by circular-shift matrices and delay-agg matrices).
    row_i = jax.lax.broadcasted_iota(jnp.int32, (L, L), 0)    # t
    col_i = jax.lax.broadcasted_iota(jnp.int32, (L, L), 1)    # s
    lane_i = jax.lax.broadcasted_iota(jnp.int32, (1, L), 1)

    # --- DataEmbedding_wo_pos ------------------------------------------------
    # TokenEmbedding = circular Conv1d(enc_in -> d_model, k=3, no bias) realised
    # as [x(t-1) | x(t) | x(t+1) | mark(t)] @ concat(w0|w1|w2|wm) in ONE matmul.
    p_m1 = (col_i == jnp.bitwise_and(row_i + (L - 1), L - 1)).astype(jnp.float32)
    p_p1 = (col_i == jnp.bitwise_and(row_i + 1, L - 1)).astype(jnp.float32)
    x_m1 = jnp.dot(p_m1, xe, preferred_element_type=jnp.float32)   # x[(t-1)%L]
    x_p1 = jnp.dot(p_p1, xe, preferred_element_type=jnp.float32)   # x[(t+1)%L]
    xcat = jnp.concatenate([x_m1, xe, x_p1, xm], axis=1)           # [L, 3C+M]
    h = jnp.dot(xcat, we_ref[...], preferred_element_type=jnp.float32)  # [L, D]

    mavg = mavg_ref[...]                           # [L, L] moving-average matrix
    sel = sel_ref[...]                             # [L*L, L] wrapped-diag selector
    inv_d = 1.0 / D

    for layer in range(E_LAYERS):
        # --- AutoCorrelationLayer projections: single fused QKV matmul --------
        qkv = (jnp.dot(h, wqkv_ref[layer], preferred_element_type=jnp.float32)
               + bqkv_ref[layer])                                  # [L, 3D]
        q = qkv[:, :D]
        k = qkv[:, D:2 * D]
        v = qkv[:, 2 * D:]

        # --- head/channel-averaged circular autocorrelation -------------------
        # S[i, j] = <q_i, k_j>;  mean_value[tau] = (1/D) * sum_j S[(j+tau)%L, j]
        # (equivalent to irfft(rfft(q) * conj(rfft(k))).mean(channels)).
        s_mat = jax.lax.dot_general(q, k, (((1,), (1,)), ((), ())),
                                    preferred_element_type=jnp.float32)  # [L, L]
        s_flat = jnp.concatenate([s_mat[i:i + 1, :] for i in range(L)],
                                 axis=1)                                 # [1, L*L]
        mv = jnp.dot(s_flat, sel, preferred_element_type=jnp.float32) * inv_d

        # --- time_delay_agg_inference: in-kernel top-k + softmax --------------
        mv_work = mv
        tops = []
        for _ in range(TOP_K):
            m = jnp.max(mv_work)
            d = jnp.min(jnp.where(mv_work == m,
                                  lane_i.astype(jnp.float32),
                                  float(L))).astype(jnp.int32)
            tops.append((m, d))
            mv_work = jnp.where(lane_i == d, -jnp.inf, mv_work)
        m_best = tops[0][0]
        exps = [jnp.exp(m - m_best) for m, _ in tops]
        inv_denom = 1.0 / sum(exps)
        agg = jnp.zeros((L, L), jnp.float32)
        for (_, d), e in zip(tops, exps):
            p_d = (col_i == jnp.bitwise_and(row_i + d, L - 1)).astype(jnp.float32)
            agg = agg + (e * inv_denom) * p_d
        v_del = jnp.dot(agg, v, preferred_element_type=jnp.float32)      # [L, D]

        # --- EncoderLayer body -------------------------------------------------
        attn = (jnp.dot(v_del, wout_ref[layer], preferred_element_type=jnp.float32)
                + bout_ref[layer])
        x1 = h + attn                                    # dropout = identity
        s1 = x1 - jnp.dot(mavg, x1, preferred_element_type=jnp.float32)  # decomp 1
        y = jnp.maximum(jnp.dot(s1, w1_ref[layer],
                                preferred_element_type=jnp.float32), 0.0)
        y = jnp.dot(y, w2_ref[layer], preferred_element_type=jnp.float32)
        z = s1 + y
        h = z - jnp.dot(mavg, z, preferred_element_type=jnp.float32)     # decomp 2

    # --- my_Layernorm (LayerNorm then subtract time-mean), take last timestep ---
    mu = jnp.mean(h, axis=-1, keepdims=True)
    var = jnp.mean((h - mu) ** 2, axis=-1, keepdims=True)
    x_hat = (h - mu) * jax.lax.rsqrt(var + EPS) * gamma_ref[...] + beta_ref[...]
    t_mean = jnp.mean(x_hat, axis=0, keepdims=True)
    out_ref[0] = x_hat[L - 1:L, :] - t_mean


# ----------------------------- pallas_call wrapper --------------------------------
def _rep(shape):
    # Replicated (grid-invariant) block: full array, constant block index.
    return pl.BlockSpec(shape, lambda b, _n=len(shape): (0,) * _n)


def ts_encoder_forward(x, fused, consts):
    L, C, M, D, F, E = SEQ_LEN, ENC_IN, MARK_DIM, D_MODEL, D_FF, E_LAYERS
    out = pl.pallas_call(
        fused_encoder_kernel,
        out_shape=jax.ShapeDtypeStruct((B, 1, D), jnp.float32),
        grid=(B,),
        in_specs=[
            pl.BlockSpec((1, L, C + M), lambda b: (b, 0, 0)),   # raw input slab
            _rep((3 * C + M, D)),                               # fused embed weight
            _rep((E, D, 3 * D)), _rep((E, 1, 3 * D)),           # fused QKV w / b
            _rep((E, D, D)), _rep((E, 1, D)),                   # out proj w / b
            _rep((E, D, F)), _rep((E, F, D)),                   # FFN (1x1 convs)
            _rep((L * L, L)),                                   # wrapped-diag selector
            _rep((L, L)),                                       # moving-average matrix
            _rep((1, D)), _rep((1, D)),                         # my_Layernorm gamma/beta
        ],
        out_specs=pl.BlockSpec((1, 1, D), lambda b: (b, 0, 0)),
        compiler_params=pltpu.CompilerParams(
            dimension_semantics=("parallel",)),                 # 1 batch per TC on v7x
    )(x, fused["we"], fused["wqkv"], fused["bqkv"], fused["wout"], fused["bout"],
      fused["w1"], fused["w2"], consts["sel"], consts["mavg"],
      fused["gamma"], fused["beta"])
    return out[:, 0, :]                                         # [B, D]


# ----------------------------- constants & params ---------------------------------
def build_consts():
    L = SEQ_LEN
    # sel[(i*L + j), tau] = 1 iff i == (j + tau) % L  (wrapped-diagonal selector)
    sel = np.zeros((L * L, L), np.float32)
    for tau in range(L):
        for j in range(L):
            sel[((j + tau) % L) * L + j, tau] = 1.0
    # edge-repeat AvgPool1d(moving_avg, stride=1) folded into an [L, L] matrix.
    p = (MOVING_AVG - 1) // 2
    mavg = np.zeros((L, L), np.float32)
    for t in range(L):
        for j in range(t - p, t + p + 1):
            mavg[t, min(max(j, 0), L - 1)] += 1.0 / MOVING_AVG
    return {"sel": jnp.asarray(sel), "mavg": jnp.asarray(mavg)}


def init_params(key):
    def nrm(k, shape, scale):
        return scale * jax.random.normal(k, shape, jnp.float32)
    ks = iter(jax.random.split(key, 4 + 10 * E_LAYERS))
    embed = {"w0": nrm(next(ks), (ENC_IN, D_MODEL), 0.3),
             "w1": nrm(next(ks), (ENC_IN, D_MODEL), 0.3),
             "w2": nrm(next(ks), (ENC_IN, D_MODEL), 0.3),
             "wm": nrm(next(ks), (MARK_DIM, D_MODEL), 0.3)}
    layers = []
    for _ in range(E_LAYERS):
        layers.append({
            "wq": nrm(next(ks), (D_MODEL, D_MODEL), 0.15),
            "wk": nrm(next(ks), (D_MODEL, D_MODEL), 0.15),
            "wv": nrm(next(ks), (D_MODEL, D_MODEL), 0.15),
            "bq": nrm(next(ks), (1, D_MODEL), 0.05),
            "bk": nrm(next(ks), (1, D_MODEL), 0.05),
            "bv": nrm(next(ks), (1, D_MODEL), 0.05),
            "wout": nrm(next(ks), (D_MODEL, D_MODEL), 0.15),
            "bout": nrm(next(ks), (1, D_MODEL), 0.05),
            "w1": nrm(next(ks), (D_MODEL, D_FF), 0.15),
            "w2": nrm(next(ks), (D_FF, D_MODEL), 0.1),
        })
    norm = {"gamma": jnp.ones((1, D_MODEL), jnp.float32),
            "beta": jnp.zeros((1, D_MODEL), jnp.float32)}
    return {"embed": embed, "layers": layers, "norm": norm}


def prepare_fused_params(params):
    # Host-side (one-time) weight concatenation: w0|w1|w2|wm and wq|wk|wv.
    pe = params["embed"]
    we = jnp.concatenate([pe["w0"], pe["w1"], pe["w2"], pe["wm"]], axis=0)   # [3C+M, D]
    lys = params["layers"]
    wqkv = jnp.stack([jnp.concatenate([lp["wq"], lp["wk"], lp["wv"]], axis=1)
                      for lp in lys])                                        # [E, D, 3D]
    bqkv = jnp.stack([jnp.concatenate([lp["bq"], lp["bk"], lp["bv"]], axis=1)
                      for lp in lys])                                        # [E, 1, 3D]
    return {"we": we, "wqkv": wqkv, "bqkv": bqkv,
            "wout": jnp.stack([lp["wout"] for lp in lys]),
            "bout": jnp.stack([lp["bout"] for lp in lys]),
            "w1": jnp.stack([lp["w1"] for lp in lys]),
            "w2": jnp.stack([lp["w2"] for lp in lys]),
            "gamma": params["norm"]["gamma"], "beta": params["norm"]["beta"]}


# ----------------------------- pure-JAX reference (for verification) -------------
def reference_forward(x, params):
    L = SEQ_LEN
    x_enc, x_mark = x[..., :ENC_IN], x[..., ENC_IN:]
    pe = params["embed"]
    h = (jnp.roll(x_enc, 1, axis=1) @ pe["w0"] + x_enc @ pe["w1"]
         + jnp.roll(x_enc, -1, axis=1) @ pe["w2"] + x_mark @ pe["wm"])
    p = (MOVING_AVG - 1) // 2

    def decomp(z):
        front = jnp.repeat(z[:, :1, :], p, axis=1)
        end = jnp.repeat(z[:, -1:, :], p, axis=1)
        zp = jnp.concatenate([front, z, end], axis=1)
        ma = jnp.stack([jnp.mean(zp[:, t:t + MOVING_AVG, :], axis=1) for t in range(L)],
                       axis=1)
        return z - ma

    for lp in params["layers"]:
        q = h @ lp["wq"] + lp["bq"]
        k = h @ lp["wk"] + lp["bk"]
        v = h @ lp["wv"] + lp["bv"]
        corr = jnp.fft.irfft(jnp.fft.rfft(q, axis=1) * jnp.conj(jnp.fft.rfft(k, axis=1)),
                             n=L, axis=1)
        mv = jnp.mean(corr, axis=-1)
        w, delay = jax.lax.top_k(mv, TOP_K)
        w = jax.nn.softmax(w, axis=-1)
        idx = (jnp.arange(L)[None, :, None] + delay[:, None, :]) % L
        gathered = v[jnp.arange(B)[:, None, None], idx, :]
        V = jnp.einsum('blkd,bk->bld', gathered, w)
        x1 = h + (V @ lp["wout"] + lp["bout"])
        s1 = decomp(x1)
        y = jnp.maximum(s1 @ lp["w1"], 0.0) @ lp["w2"]
        h = decomp(s1 + y)
    g, bb = params["norm"]["gamma"][0], params["norm"]["beta"][0]
    mu = jnp.mean(h, -1, keepdims=True)
    var = jnp.mean((h - mu) ** 2, -1, keepdims=True)
    xh = (h - mu) * jax.lax.rsqrt(var + EPS) * g + bb
    return xh[:, -1, :] - jnp.mean(xh, axis=1)


# ----------------------------- main ------------------------------------------------
if __name__ == "__main__":
    key = jax.random.PRNGKey(0)
    kx, kp = jax.random.split(key)
    x = jax.random.normal(kx, (B, SEQ_LEN, ENC_IN + MARK_DIM), jnp.float32)
    params = init_params(kp)
    consts = build_consts()
    fused = prepare_fused_params(params)

    out = ts_encoder_forward(x, fused, consts)
    out = jax.block_until_ready(out)
    assert out.shape == (B, D_MODEL), out.shape

    ref = reference_forward(x, params)
    np.testing.assert_allclose(np.asarray(out), np.asarray(ref), rtol=2e-3, atol=2e-3)
    print("KERNEL_OK")
</pallas_src>

<mosaic_0001>
module attributes {stable_mosaic.version = 11 : i64} {
  func.func @fused_encoder_kernel(%arg0: i32, %arg1: memref<1x8x8xf32, #tpu.memory_space<vmem>>, %arg2: memref<16x32xf32, #tpu.memory_space<vmem>>, %arg3: memref<2x32x96xf32, #tpu.memory_space<vmem>>, %arg4: memref<2x1x96xf32, #tpu.memory_space<vmem>>, %arg5: memref<2x32x32xf32, #tpu.memory_space<vmem>>, %arg6: memref<2x1x32xf32, #tpu.memory_space<vmem>>, %arg7: memref<2x32x64xf32, #tpu.memory_space<vmem>>, %arg8: memref<2x64x32xf32, #tpu.memory_space<vmem>>, %arg9: memref<64x8xf32, #tpu.memory_space<vmem>>, %arg10: memref<8x8xf32, #tpu.memory_space<vmem>>, %arg11: memref<1x32xf32, #tpu.memory_space<vmem>>, %arg12: memref<1x32xf32, #tpu.memory_space<vmem>>, %arg13: memref<1x1x32xf32, #tpu.memory_space<vmem>>) attributes {dimension_semantics = [#tpu.dimension_semantics<parallel>], iteration_bounds = array<i64: 2>, scalar_prefetch = 0 : i64, scratch_operands = 0 : i64, tpu.core_type = #tpu.core_type<tc>, window_params = [{transform_indices = @transform_0, window_bounds = array<i64: 1, 8, 8>}, {pipeline_mode = #tpu.pipeline_mode<synchronous>, transform_indices = @transform_1, window_bounds = array<i64: 16, 32>}, {pipeline_mode = #tpu.pipeline_mode<synchronous>, transform_indices = @transform_2, window_bounds = array<i64: 2, 32, 96>}, {pipeline_mode = #tpu.pipeline_mode<synchronous>, transform_indices = @transform_3, window_bounds = array<i64: 2, 1, 96>}, {pipeline_mode = #tpu.pipeline_mode<synchronous>, transform_indices = @transform_4, window_bounds = array<i64: 2, 32, 32>}, {pipeline_mode = #tpu.pipeline_mode<synchronous>, transform_indices = @transform_5, window_bounds = array<i64: 2, 1, 32>}, {pipeline_mode = #tpu.pipeline_mode<synchronous>, transform_indices = @transform_6, window_bounds = array<i64: 2, 32, 64>}, {pipeline_mode = #tpu.pipeline_mode<synchronous>, transform_indices = @transform_7, window_bounds = array<i64: 2, 64, 32>}, {pipeline_mode = #tpu.pipeline_mode<synchronous>, transform_indices = @transform_8, window_bounds = array<i64: 64, 8>}, {pipeline_mode = #tpu.pipeline_mode<synchronous>, transform_indices = @transform_9, window_bounds = array<i64: 8, 8>}, {pipeline_mode = #tpu.pipeline_mode<synchronous>, transform_indices = @transform_10, window_bounds = array<i64: 1, 32>}, {pipeline_mode = #tpu.pipeline_mode<synchronous>, transform_indices = @transform_11, window_bounds = array<i64: 1, 32>}, {transform_indices = @transform_12, window_bounds = array<i64: 1, 1, 32>}]} {
    %c0 = arith.constant 0 : index
    %c0_0 = arith.constant 0 : index
    %c0_1 = arith.constant 0 : index
    %0 = vector.load %arg1[%c0, %c0_0, %c0_1] : memref<1x8x8xf32, #tpu.memory_space<vmem>>, vector<1x8x8xf32>
    %1 = vector.shape_cast %0 : vector<1x8x8xf32> to vector<8x8xf32>
    %2 = vector.extract_strided_slice %1 {offsets = [0, 0], sizes = [8, 4], strides = [1, 1]} : vector<8x8xf32> to vector<8x4xf32>
    %3 = vector.extract_strided_slice %1 {offsets = [0, 4], sizes = [8, 4], strides = [1, 1]} : vector<8x8xf32> to vector<8x4xf32>
    %4 = tpu.iota {dimensions = array<i32: 0>} : vector<8x8xi32>
    %5 = tpu.iota {dimensions = array<i32: 1>} : vector<8x8xi32>
    %6 = tpu.iota {dimensions = array<i32: 1>} : vector<1x8xi32>
    %c7_i32 = arith.constant 7 : i32
    %7 = vector.broadcast %c7_i32 : i32 to vector<8x8xi32>
    %8 = arith.addi %4, %7 : vector<8x8xi32>
    %c7_i32_2 = arith.constant 7 : i32
    %9 = vector.broadcast %c7_i32_2 : i32 to vector<8x8xi32>
    %10 = arith.andi %8, %9 : vector<8x8xi32>
    %11 = arith.cmpi eq, %5, %10 : vector<8x8xi32>
    %12 = arith.extui %11 : vector<8x8xi1> to vector<8x8xi32>
    %13 = arith.sitofp %12 : vector<8x8xi32> to vector<8x8xf32>
    %c1_i32 = arith.constant 1 : i32
    %14 = vector.broadcast %c1_i32 : i32 to vector<8x8xi32>
    %15 = arith.addi %4, %14 : vector<8x8xi32>
    %c7_i32_3 = arith.constant 7 : i32
    %16 = vector.broadcast %c7_i32_3 : i32 to vector<8x8xi32>
    %17 = arith.andi %15, %16 : vector<8x8xi32>
    %18 = arith.cmpi eq, %5, %17 : vector<8x8xi32>
    %19 = arith.extui %18 : vector<8x8xi1> to vector<8x8xi32>
    %20 = arith.sitofp %19 : vector<8x8xi32> to vector<8x8xf32>
    %cst = arith.constant dense<0.000000e+00> : vector<8x4xf32>
    %21 = tpu.matmul %13, %2, %cst {dimension_numbers = #tpu.dot_dimension_numbers<[1], [0], [0], [1], [0, 0, 1, 1], [], []>} : vector<8x8xf32>, vector<8x4xf32>, vector<8x4xf32> -> vector<8x4xf32>
    %cst_4 = arith.constant dense<0.000000e+00> : vector<8x4xf32>
    %22 = tpu.matmul %20, %2, %cst_4 {dimension_numbers = #tpu.dot_dimension_numbers<[1], [0], [0], [1], [0, 0, 1, 1], [], []>} : vector<8x8xf32>, vector<8x4xf32>, vector<8x4xf32> -> vector<8x4xf32>
    %23 = tpu.concatenate %21, %2, %22, %3 in 1 : vector<8x4xf32>, vector<8x4xf32>, vector<8x4xf32>, vector<8x4xf32> -> vector<8x16xf32>
    %c0_5 = arith.constant 0 : index
    %c0_6 = arith.constant 0 : index
    %24 = vector.load %arg2[%c0_5, %c0_6] : memref<16x32xf32, #tpu.memory_space<vmem>>, vector<16x32xf32>
    %cst_7 = arith.constant dense<0.000000e+00> : vector<8x32xf32>
    %25 = tpu.matmul %23, %24, %cst_7 {dimension_numbers = #tpu.dot_dimension_numbers<[1], [0], [0], [1], [0, 0, 1, 1], [], []>} : vector<8x16xf32>, vector<16x32xf32>, vector<8x32xf32> -> vector<8x32xf32>
    %c0_8 = arith.constant 0 : index
    %c0_9 = arith.constant 0 : index
    %26 = vector.load %arg10[%c0_8, %c0_9] : memref<8x8xf32, #tpu.memory_space<vmem>>, vector<8x8xf32>
    %c0_10 = arith.constant 0 : index
    %c0_11 = arith.constant 0 : index
    %27 = vector.load %arg9[%c0_10, %c0_11] : memref<64x8xf32, #tpu.memory_space<vmem>>, vector<64x8xf32>
    %c0_12 = arith.constant 0 : index
    %c0_13 = arith.constant 0 : index
    %c0_14 = arith.constant 0 : index
    %28 = vector.load %arg3[%c0_12, %c0_13, %c0_14] : memref<2x32x96xf32, #tpu.memory_space<vmem>>, vector<1x32x96xf32>
    %29 = vector.shape_cast %28 : vector<1x32x96xf32> to vector<32x96xf32>
    %cst_15 = arith.constant dense<0.000000e+00> : vector<8x96xf32>
    %30 = tpu.matmul %25, %29, %cst_15 {dimension_numbers = #tpu.dot_dimension_numbers<[1], [0], [0], [1], [0, 0, 1, 1], [], []>} : vector<8x32xf32>, vector<32x96xf32>, vector<8x96xf32> -> vector<8x96xf32>
    %c0_16 = arith.constant 0 : index
    %c0_17 = arith.constant 0 : index
    %c0_18 = arith.constant 0 : index
    %31 = vector.load %arg4[%c0_16, %c0_17, %c0_18] : memref<2x1x96xf32, #tpu.memory_space<vmem>>, vector<1x1x96xf32>
    %32 = vector.shape_cast %31 : vector<1x1x96xf32> to vector<1x96xf32>
    %33 = vector.broadcast %32 : vector<1x96xf32> to vector<8x96xf32>
    %34 = arith.addf %30, %33 : vector<8x96xf32>
    %35 = vector.extract_strided_slice %34 {offsets = [0, 0], sizes = [8, 32], strides = [1, 1]} : vector<8x96xf32> to vector<8x32xf32>
    %36 = vector.extract_strided_slice %34 {offsets = [0, 32], sizes = [8, 32], strides = [1, 1]} : vector<8x96xf32> to vector<8x32xf32>
    %37 = vector.extract_strided_slice %34 {offsets = [0, 64], sizes = [8, 32], strides = [1, 1]} : vector<8x96xf32> to vector<8x32xf32>
    %cst_19 = arith.constant dense<0.000000e+00> : vector<8x8xf32>
    %38 = tpu.matmul %35, %36, %cst_19 {dimension_numbers = #tpu.dot_dimension_numbers<[1], [1], [0], [0], [0, 0, 1, 0], [], []>} : vector<8x32xf32>, vector<8x32xf32>, vector<8x8xf32> -> vector<8x8xf32>
    %39 = vector.extract_strided_slice %38 {offsets = [0, 0], sizes = [1, 8], strides = [1, 1]} : vector<8x8xf32> to vector<1x8xf32>
    %40 = vector.extract_strided_slice %38 {offsets = [1, 0], sizes = [1, 8], strides = [1, 1]} : vector<8x8xf32> to vector<1x8xf32>
    %41 = vector.extract_strided_slice %38 {offsets = [2, 0], sizes = [1, 8], strides = [1, 1]} : vector<8x8xf32> to vector<1x8xf32>
    %42 = vector.extract_strided_slice %38 {offsets = [3, 0], sizes = [1, 8], strides = [1, 1]} : vector<8x8xf32> to vector<1x8xf32>
    %43 = vector.extract_strided_slice %38 {offsets = [4, 0], sizes = [1, 8], strides = [1, 1]} : vector<8x8xf32> to vector<1x8xf32>
    %44 = vector.extract_strided_slice %38 {offsets = [5, 0], sizes = [1, 8], strides = [1, 1]} : vector<8x8xf32> to vector<1x8xf32>
    %45 = vector.extract_strided_slice %38 {offsets = [6, 0], sizes = [1, 8], strides = [1, 1]} : vector<8x8xf32> to vector<1x8xf32>
    %46 = vector.extract_strided_slice %38 {offsets = [7, 0], sizes = [1, 8], strides = [1, 1]} : vector<8x8xf32> to vector<1x8xf32>
    %47 = tpu.concatenate %39, %40, %41, %42, %43, %44, %45, %46 in 1 : vector<1x8xf32>, vector<1x8xf32>, vector<1x8xf32>, vector<1x8xf32>, vector<1x8xf32>, vector<1x8xf32>, vector<1x8xf32>, vector<1x8xf32> -> vector<1x64xf32>
    %cst_20 = arith.constant dense<0.000000e+00> : vector<1x8xf32>
    %48 = tpu.matmul %47, %27, %cst_20 {dimension_numbers = #tpu.dot_dimension_numbers<[1], [0], [0], [1], [0, 0, 1, 1], [], []>} : vector<1x64xf32>, vector<64x8xf32>, vector<1x8xf32> -> vector<1x8xf32>
    %cst_21 = arith.constant 3.125000e-02 : f32
    %49 = vector.broadcast %cst_21 : f32 to vector<1x8xf32>
    %50 = arith.mulf %48, %49 : vector<1x8xf32>
    %51 = vector.shape_cast %50 : vector<1x8xf32> to vector<1x1x8xf32>
    %cst_22 = arith.constant dense<0xFF800000> : vector<1xf32>
    %52 = vector.multi_reduction <maximumf>, %51, %cst_22 [1, 2] : vector<1x1x8xf32> to vector<1xf32>
    %53 = vector.shape_cast %52 : vector<1xf32> to vector<1x1x1xf32>
    %54 = vector.extract %53[0, 0, 0] : f32 from vector<1x1x1xf32>
    %55 = vector.broadcast %54 : f32 to vector<1x8xf32>
    %56 = arith.cmpf oeq, %50, %55 : vector<1x8xf32>
    %57 = arith.sitofp %6 : vector<1x8xi32> to vector<1x8xf32>
    %cst_23 = arith.constant 8.000000e+00 : f32
    %58 = vector.broadcast %cst_23 : f32 to vector<1x8xf32>
    %59 = arith.select %56, %57, %58 : vector<1x8xi1>, vector<1x8xf32>
    %60 = vector.shape_cast %59 : vector<1x8xf32> to vector<1x1x8xf32>
    %cst_24 = arith.constant dense<0x7F800000> : vector<1xf32>
    %61 = vector.multi_reduction <minimumf>, %60, %cst_24 [1, 2] : vector<1x1x8xf32> to vector<1xf32>
    %62 = vector.shape_cast %61 : vector<1xf32> to vector<1x1x1xf32>
    %63 = vector.extract %62[0, 0, 0] : f32 from vector<1x1x1xf32>
    %64 = arith.fptosi %63 : f32 to i32
    %65 = vector.broadcast %64 : i32 to vector<1x8xi32>
    %66 = arith.cmpi eq, %6, %65 : vector<1x8xi32>
    %cst_25 = arith.constant 0xFF800000 : f32
    %67 = vector.broadcast %cst_25 : f32 to vector<1x8xf32>
    %68 = arith.select %66, %67, %50 : vector<1x8xi1>, vector<1x8xf32>
    %69 = vector.shape_cast %68 : vector<1x8xf32> to vector<1x1x8xf32>
    %cst_26 = arith.constant dense<0xFF800000> : vector<1xf32>
    %70 = vector.multi_reduction <maximumf>, %69, %cst_26 [1, 2] : vector<1x1x8xf32> to vector<1xf32>
    %71 = vector.shape_cast %70 : vector<1xf32> to vector<1x1x1xf32>
    %72 = vector.extract %71[0, 0, 0] : f32 from vector<1x1x1xf32>
    %73 = vector.broadcast %72 : f32 to vector<1x8xf32>
    %74 = arith.cmpf oeq, %68, %73 : vector<1x8xf32>
    %75 = arith.sitofp %6 : vector<1x8xi32> to vector<1x8xf32>
    %cst_27 = arith.constant 8.000000e+00 : f32
    %76 = vector.broadcast %cst_27 : f32 to vector<1x8xf32>
    %77 = arith.select %74, %75, %76 : vector<1x8xi1>, vector<1x8xf32>
    %78 = vector.shape_cast %77 : vector<1x8xf32> to vector<1x1x8xf32>
    %cst_28 = arith.constant dense<0x7F800000> : vector<1xf32>
    %79 = vector.multi_reduction <minimumf>, %78, %cst_28 [1, 2] : vector<1x1x8xf32> to vector<1xf32>
    %80 = vector.shape_cast %79 : vector<1xf32> to vector<1x1x1xf32>
    %81 = vector.extract %80[0, 0, 0] : f32 from vector<1x1x1xf32>
    %82 = arith.fptosi %81 : f32 to i32
    %83 = arith.subf %54, %54 : f32
    %84 = math.exp %83 : f32
    %85 = arith.subf %72, %54 : f32
    %86 = math.exp %85 : f32
    %cst_29 = arith.constant 0.000000e+00 : f32
    %87 = arith.addf %cst_29, %84 : f32
    %88 = arith.addf %87, %86 : f32
    %cst_30 = arith.constant 1.000000e+00 : f32
    %89 = arith.divf %cst_30, %88 : f32
    %cst_31 = arith.constant 0.000000e+00 : f32
    %90 = vector.broadcast %cst_31 : f32 to vector<8x8xf32>
    %91 = vector.broadcast %64 : i32 to vector<8x8xi32>
    %92 = arith.addi %4, %91 : vector<8x8xi32>
    %c7_i32_32 = arith.constant 7 : i32
    %93 = vector.broadcast %c7_i32_32 : i32 to vector<8x8xi32>
    %94 = arith.andi %92, %93 : vector<8x8xi32>
    %95 = arith.cmpi eq, %5, %94 : vector<8x8xi32>
    %96 = arith.extui %95 : vector<8x8xi1> to vector<8x8xi32>
    %97 = arith.sitofp %96 : vector<8x8xi32> to vector<8x8xf32>
    %98 = arith.mulf %84, %89 : f32
    %99 = vector.broadcast %98 : f32 to vector<8x8xf32>
    %100 = arith.mulf %99, %97 : vector<8x8xf32>
    %101 = arith.addf %90, %100 : vector<8x8xf32>
    %102 = vector.broadcast %82 : i32 to vector<8x8xi32>
    %103 = arith.addi %4, %102 : vector<8x8xi32>
    %c7_i32_33 = arith.constant 7 : i32
    %104 = vector.broadcast %c7_i32_33 : i32 to vector<8x8xi32>
    %105 = arith.andi %103, %104 : vector<8x8xi32>
    %106 = arith.cmpi eq, %5, %105 : vector<8x8xi32>
    %107 = arith.extui %106 : vector<8x8xi1> to vector<8x8xi32>
    %108 = arith.sitofp %107 : vector<8x8xi32> to vector<8x8xf32>
    %109 = arith.mulf %86, %89 : f32
    %110 = vector.broadcast %109 : f32 to vector<8x8xf32>
    %111 = arith.mulf %110, %108 : vector<8x8xf32>
    %112 = arith.addf %101, %111 : vector<8x8xf32>
    %cst_34 = arith.constant dense<0.000000e+00> : vector<8x32xf32>
    %113 = tpu.matmul %112, %37, %cst_34 {dimension_numbers = #tpu.dot_dimension_numbers<[1], [0], [0], [1], [0, 0, 1, 1], [], []>} : vector<8x8xf32>, vector<8x32xf32>, vector<8x32xf32> -> vector<8x32xf32>
    %c0_35 = arith.constant 0 : index
    %c0_36 = arith.constant 0 : index
    %c0_37 = arith.constant 0 : index
    %114 = vector.load %arg5[%c0_35, %c0_36, %c0_37] : memref<2x32x32xf32, #tpu.memory_space<vmem>>, vector<1x32x32xf32>
    %115 = vector.shape_cast %114 : vector<1x32x32xf32> to vector<32x32xf32>
    %cst_38 = arith.constant dense<0.000000e+00> : vector<8x32xf32>
    %116 = tpu.matmul %113, %115, %cst_38 {dimension_numbers = #tpu.dot_dimension_numbers<[1], [0], [0], [1], [0, 0, 1, 1], [], []>} : vector<8x32xf32>, vector<32x32xf32>, vector<8x32xf32> -> vector<8x32xf32>
    %c0_39 = arith.constant 0 : index
    %c0_40 = arith.constant 0 : index
    %c0_41 = arith.constant 0 : index
    %117 = vector.load %arg6[%c0_39, %c0_40, %c0_41] : memref<2x1x32xf32, #tpu.memory_space<vmem>>, vector<1x1x32xf32>
    %118 = vector.shape_cast %117 : vector<1x1x32xf32> to vector<1x32xf32>
    %119 = vector.broadcast %118 : vector<1x32xf32> to vector<8x32xf32>
    %120 = arith.addf %116, %119 : vector<8x32xf32>
    %121 = arith.addf %25, %120 : vector<8x32xf32>
    %cst_42 = arith.constant dense<0.000000e+00> : vector<8x32xf32>
    %122 = tpu.matmul %26, %121, %cst_42 {dimension_numbers = #tpu.dot_dimension_numbers<[1], [0], [0], [1], [0, 0, 1, 1], [], []>} : vector<8x8xf32>, vector<8x32xf32>, vector<8x32xf32> -> vector<8x32xf32>
    %123 = arith.subf %121, %122 : vector<8x32xf32>
    %c0_43 = arith.constant 0 : index
    %c0_44 = arith.constant 0 : index
    %c0_45 = arith.constant 0 : index
    %124 = vector.load %arg7[%c0_43, %c0_44, %c0_45] : memref<2x32x64xf32, #tpu.memory_space<vmem>>, vector<1x32x64xf32>
    %125 = vector.shape_cast %124 : vector<1x32x64xf32> to vector<32x64xf32>
    %cst_46 = arith.constant dense<0.000000e+00> : vector<8x64xf32>
    %126 = tpu.matmul %123, %125, %cst_46 {dimension_numbers = #tpu.dot_dimension_numbers<[1], [0], [0], [1], [0, 0, 1, 1], [], []>} : vector<8x32xf32>, vector<32x64xf32>, vector<8x64xf32> -> vector<8x64xf32>
    %cst_47 = arith.constant 0.000000e+00 : f32
    %127 = vector.broadcast %cst_47 : f32 to vector<8x64xf32>
    %128 = arith.maximumf %126, %127 : vector<8x64xf32>
    %c0_48 = arith.constant 0 : index
    %c0_49 = arith.constant 0 : index
    %c0_50 = arith.constant 0 : index
    %129 = vector.load %arg8[%c0_48, %c0_49, %c0_50] : memref<2x64x32xf32, #tpu.memory_space<vmem>>, vector<1x64x32xf32>
    %130 = vector.shape_cast %129 : vector<1x64x32xf32> to vector<64x32xf32>
    %cst_51 = arith.constant dense<0.000000e+00> : vector<8x32xf32>
    %131 = tpu.matmul %128, %130, %cst_51 {dimension_numbers = #tpu.dot_dimension_numbers<[1], [0], [0], [1], [0, 0, 1, 1], [], []>} : vector<8x64xf32>, vector<64x32xf32>, vector<8x32xf32> -> vector<8x32xf32>
    %132 = arith.addf %123, %131 : vector<8x32xf32>
    %cst_52 = arith.constant dense<0.000000e+00> : vector<8x32xf32>
    %133 = tpu.matmul %26, %132, %cst_52 {dimension_numbers = #tpu.dot_dimension_numbers<[1], [0], [0], [1], [0, 0, 1, 1], [], []>} : vector<8x8xf32>, vector<8x32xf32>, vector<8x32xf32> -> vector<8x32xf32>
    %134 = arith.subf %132, %133 : vector<8x32xf32>
    %c1 = arith.constant 1 : index
    %c0_53 = arith.constant 0 : index
    %c0_54 = arith.constant 0 : index
    %135 = vector.load %arg3[%c1, %c0_53, %c0_54] : memref<2x32x96xf32, #tpu.memory_space<vmem>>, vector<1x32x96xf32>
    %136 = vector.shape_cast %135 : vector<1x32x96xf32> to vector<32x96xf32>
    %cst_55 = arith.constant dense<0.000000e+00> : vector<8x96xf32>
    %137 = tpu.matmul %134, %136, %cst_55 {dimension_numbers = #tpu.dot_dimension_numbers<[1], [0], [0], [1], [0, 0, 1, 1], [], []>} : vector<8x32xf32>, vector<32x96xf32>, vector<8x96xf32> -> vector<8x96xf32>
    %c1_56 = arith.constant 1 : index
    %c0_57 = arith.constant 0 : index
    %c0_58 = arith.constant 0 : index
    %138 = vector.load %arg4[%c1_56, %c0_57, %c0_58] : memref<2x1x96xf32, #tpu.memory_space<vmem>>, vector<1x1x96xf32>
    %139 = vector.shape_cast %138 : vector<1x1x96xf32> to vector<1x96xf32>
    %140 = vector.broadcast %139 : vector<1x96xf32> to vector<8x96xf32>
    %141 = arith.addf %137, %140 : vector<8x96xf32>
    %142 = vector.extract_strided_slice %141 {offsets = [0, 0], sizes = [8, 32], strides = [1, 1]} : vector<8x96xf32> to vector<8x32xf32>
    %143 = vector.extract_strided_slice %141 {offsets = [0, 32], sizes = [8, 32], strides = [1, 1]} : vector<8x96xf32> to vector<8x32xf32>
    %144 = vector.extract_strided_slice %141 {offsets = [0, 64], sizes = [8, 32], strides = [1, 1]} : vector<8x96xf32> to vector<8x32xf32>
    %cst_59 = arith.constant dense<0.000000e+00> : vector<8x8xf32>
    %145 = tpu.matmul %142, %143, %cst_59 {dimension_numbers = #tpu.dot_dimension_numbers<[1], [1], [0], [0], [0, 0, 1, 0], [], []>} : vector<8x32xf32>, vector<8x32xf32>, vector<8x8xf32> -> vector<8x8xf32>
    %146 = vector.extract_strided_slice %145 {offsets = [0, 0], sizes = [1, 8], strides = [1, 1]} : vector<8x8xf32> to vector<1x8xf32>
    %147 = vector.extract_strided_slice %145 {offsets = [1, 0], sizes = [1, 8], strides = [1, 1]} : vector<8x8xf32> to vector<1x8xf32>
    %148 = vector.extract_strided_slice %145 {offsets = [2, 0], sizes = [1, 8], strides = [1, 1]} : vector<8x8xf32> to vector<1x8xf32>
    %149 = vector.extract_strided_slice %145 {offsets = [3, 0], sizes = [1, 8], strides = [1, 1]} : vector<8x8xf32> to vector<1x8xf32>
    %150 = vector.extract_strided_slice %145 {offsets = [4, 0], sizes = [1, 8], strides = [1, 1]} : vector<8x8xf32> to vector<1x8xf32>
    %151 = vector.extract_strided_slice %145 {offsets = [5, 0], sizes = [1, 8], strides = [1, 1]} : vector<8x8xf32> to vector<1x8xf32>
    %152 = vector.extract_strided_slice %145 {offsets = [6, 0], sizes = [1, 8], strides = [1, 1]} : vector<8x8xf32> to vector<1x8xf32>
    %153 = vector.extract_strided_slice %145 {offsets = [7, 0], sizes = [1, 8], strides = [1, 1]} : vector<8x8xf32> to vector<1x8xf32>
    %154 = tpu.concatenate %146, %147, %148, %149, %150, %151, %152, %153 in 1 : vector<1x8xf32>, vector<1x8xf32>, vector<1x8xf32>, vector<1x8xf32>, vector<1x8xf32>, vector<1x8xf32>, vector<1x8xf32>, vector<1x8xf32> -> vector<1x64xf32>
    %cst_60 = arith.constant dense<0.000000e+00> : vector<1x8xf32>
    %155 = tpu.matmul %154, %27, %cst_60 {dimension_numbers = #tpu.dot_dimension_numbers<[1], [0], [0], [1], [0, 0, 1, 1], [], []>} : vector<1x64xf32>, vector<64x8xf32>, vector<1x8xf32> -> vector<1x8xf32>
    %cst_61 = arith.constant 3.125000e-02 : f32
    %156 = vector.broadcast %cst_61 : f32 to vector<1x8xf32>
    %157 = arith.mulf %155, %156 : vector<1x8xf32>
    %158 = vector.shape_cast %157 : vector<1x8xf32> to vector<1x1x8xf32>
    %cst_62 = arith.constant dense<0xFF800000> : vector<1xf32>
    %159 = vector.multi_reduction <maximumf>, %158, %cst_62 [1, 2] : vector<1x1x8xf32> to vector<1xf32>
    %160 = vector.shape_cast %159 : vector<1xf32> to vector<1x1x1xf32>
    %161 = vector.extract %160[0, 0, 0] : f32 from vector<1x1x1xf32>
    %162 = vector.broadcast %161 : f32 to vector<1x8xf32>
    %163 = arith.cmpf oeq, %157, %162 : vector<1x8xf32>
    %164 = arith.sitofp %6 : vector<1x8xi32> to vector<1x8xf32>
    %cst_63 = arith.constant 8.000000e+00 : f32
    %165 = vector.broadcast %cst_63 : f32 to vector<1x8xf32>
    %166 = arith.select %163, %164, %165 : vector<1x8xi1>, vector<1x8xf32>
    %167 = vector.shape_cast %166 : vector<1x8xf32> to vector<1x1x8xf32>
    %cst_64 = arith.constant dense<0x7F800000> : vector<1xf32>
    %168 = vector.multi_reduction <minimumf>, %167, %cst_64 [1, 2] : vector<1x1x8xf32> to vector<1xf32>
    %169 = vector.shape_cast %168 : vector<1xf32> to vector<1x1x1xf32>
    %170 = vector.extract %169[0, 0, 0] : f32 from vector<1x1x1xf32>
    %171 = arith.fptosi %170 : f32 to i32
    %172 = vector.broadcast %171 : i32 to vector<1x8xi32>
    %173 = arith.cmpi eq, %6, %172 : vector<1x8xi32>
    %cst_65 = arith.constant 0xFF800000 : f32
    %174 = vector.broadcast %cst_65 : f32 to vector<1x8xf32>
    %175 = arith.select %173, %174, %157 : vector<1x8xi1>, vector<1x8xf32>
    %176 = vector.shape_cast %175 : vector<1x8xf32> to vector<1x1x8xf32>
    %cst_66 = arith.constant dense<0xFF800000> : vector<1xf32>
    %177 = vector.multi_reduction <maximumf>, %176, %cst_66 [1, 2] : vector<1x1x8xf32> to vector<1xf32>
    %178 = vector.shape_cast %177 : vector<1xf32> to vector<1x1x1xf32>
    %179 = vector.extract %178[0, 0, 0] : f32 from vector<1x1x1xf32>
    %180 = vector.broadcast %179 : f32 to vector<1x8xf32>
    %181 = arith.cmpf oeq, %175, %180 : vector<1x8xf32>
    %182 = arith.sitofp %6 : vector<1x8xi32> to vector<1x8xf32>
    %cst_67 = arith.constant 8.000000e+00 : f32
    %183 = vector.broadcast %cst_67 : f32 to vector<1x8xf32>
    %184 = arith.select %181, %182, %183 : vector<1x8xi1>, vector<1x8xf32>
    %185 = vector.shape_cast %184 : vector<1x8xf32> to vector<1x1x8xf32>
    %cst_68 = arith.constant dense<0x7F800000> : vector<1xf32>
    %186 = vector.multi_reduction <minimumf>, %185, %cst_68 [1, 2] : vector<1x1x8xf32> to vector<1xf32>
    %187 = vector.shape_cast %186 : vector<1xf32> to vector<1x1x1xf32>
    %188 = vector.extract %187[0, 0, 0] : f32 from vector<1x1x1xf32>
    %189 = arith.fptosi %188 : f32 to i32
    %190 = arith.subf %161, %161 : f32
    %191 = math.exp %190 : f32
    %192 = arith.subf %179, %161 : f32
    %193 = math.exp %192 : f32
    %cst_69 = arith.constant 0.000000e+00 : f32
    %194 = arith.addf %cst_69, %191 : f32
    %195 = arith.addf %194, %193 : f32
    %cst_70 = arith.constant 1.000000e+00 : f32
    %196 = arith.divf %cst_70, %195 : f32
    %cst_71 = arith.constant 0.000000e+00 : f32
    %197 = vector.broadcast %cst_71 : f32 to vector<8x8xf32>
    %198 = vector.broadcast %171 : i32 to vector<8x8xi32>
    %199 = arith.addi %4, %198 : vector<8x8xi32>
    %c7_i32_72 = arith.constant 7 : i32
    %200 = vector.broadcast %c7_i32_72 : i32 to vector<8x8xi32>
    %201 = arith.andi %199, %200 : vector<8x8xi32>
    %202 = arith.cmpi eq, %5, %201 : vector<8x8xi32>
    %203 = arith.extui %202 : vector<8x8xi1> to vector<8x8xi32>
    %204 = arith.sitofp %203 : vector<8x8xi32> to vector<8x8xf32>
    %205 = arith.mulf %191, %196 : f32
    %206 = vector.broadcast %205 : f32 to vector<8x8xf32>
    %207 = arith.mulf %206, %204 : vector<8x8xf32>
    %208 = arith.addf %197, %207 : vector<8x8xf32>
    %209 = vector.broadcast %189 : i32 to vector<8x8xi32>
    %210 = arith.addi %4, %209 : vector<8x8xi32>
    %c7_i32_73 = arith.constant 7 : i32
    %211 = vector.broadcast %c7_i32_73 : i32 to vector<8x8xi32>
    %212 = arith.andi %210, %211 : vector<8x8xi32>
    %213 = arith.cmpi eq, %5, %212 : vector<8x8xi32>
    %214 = arith.extui %213 : vector<8x8xi1> to vector<8x8xi32>
    %215 = arith.sitofp %214 : vector<8x8xi32> to vector<8x8xf32>
    %216 = arith.mulf %193, %196 : f32
    %217 = vector.broadcast %216 : f32 to vector<8x8xf32>
    %218 = arith.mulf %217, %215 : vector<8x8xf32>
    %219 = arith.addf %208, %218 : vector<8x8xf32>
    %cst_74 = arith.constant dense<0.000000e+00> : vector<8x32xf32>
    %220 = tpu.matmul %219, %144, %cst_74 {dimension_numbers = #tpu.dot_dimension_numbers<[1], [0], [0], [1], [0, 0, 1, 1], [], []>} : vector<8x8xf32>, vector<8x32xf32>, vector<8x32xf32> -> vector<8x32xf32>
    %c1_75 = arith.constant 1 : index
    %c0_76 = arith.constant 0 : index
    %c0_77 = arith.constant 0 : index
    %221 = vector.load %arg5[%c1_75, %c0_76, %c0_77] : memref<2x32x32xf32, #tpu.memory_space<vmem>>, vector<1x32x32xf32>
    %222 = vector.shape_cast %221 : vector<1x32x32xf32> to vector<32x32xf32>
    %cst_78 = arith.constant dense<0.000000e+00> : vector<8x32xf32>
    %223 = tpu.matmul %220, %222, %cst_78 {dimension_numbers = #tpu.dot_dimension_numbers<[1], [0], [0], [1], [0, 0, 1, 1], [], []>} : vector<8x32xf32>, vector<32x32xf32>, vector<8x32xf32> -> vector<8x32xf32>
    %c1_79 = arith.constant 1 : index
    %c0_80 = arith.constant 0 : index
    %c0_81 = arith.constant 0 : index
    %224 = vector.load %arg6[%c1_79, %c0_80, %c0_81] : memref<2x1x32xf32, #tpu.memory_space<vmem>>, vector<1x1x32xf32>
    %225 = vector.shape_cast %224 : vector<1x1x32xf32> to vector<1x32xf32>
    %226 = vector.broadcast %225 : vector<1x32xf32> to vector<8x32xf32>
    %227 = arith.addf %223, %226 : vector<8x32xf32>
    %228 = arith.addf %134, %227 : vector<8x32xf32>
    %cst_82 = arith.constant dense<0.000000e+00> : vector<8x32xf32>
    %229 = tpu.matmul %26, %228, %cst_82 {dimension_numbers = #tpu.dot_dimension_numbers<[1], [0], [0], [1], [0, 0, 1, 1], [], []>} : vector<8x8xf32>, vector<8x32xf32>, vector<8x32xf32> -> vector<8x32xf32>
    %230 = arith.subf %228, %229 : vector<8x32xf32>
    %c1_83 = arith.constant 1 : index
    %c0_84 = arith.constant 0 : index
    %c0_85 = arith.constant 0 : index
    %231 = vector.load %arg7[%c1_83, %c0_84, %c0_85] : memref<2x32x64xf32, #tpu.memory_space<vmem>>, vector<1x32x64xf32>
    %232 = vector.shape_cast %231 : vector<1x32x64xf32> to vector<32x64xf32>
    %cst_86 = arith.constant dense<0.000000e+00> : vector<8x64xf32>
    %233 = tpu.matmul %230, %232, %cst_86 {dimension_numbers = #tpu.dot_dimension_numbers<[1], [0], [0], [1], [0, 0, 1, 1], [], []>} : vector<8x32xf32>, vector<32x64xf32>, vector<8x64xf32> -> vector<8x64xf32>
    %cst_87 = arith.constant 0.000000e+00 : f32
    %234 = vector.broadcast %cst_87 : f32 to vector<8x64xf32>
    %235 = arith.maximumf %233, %234 : vector<8x64xf32>
    %c1_88 = arith.constant 1 : index
    %c0_89 = arith.constant 0 : index
    %c0_90 = arith.constant 0 : index
    %236 = vector.load %arg8[%c1_88, %c0_89, %c0_90] : memref<2x64x32xf32, #tpu.memory_space<vmem>>, vector<1x64x32xf32>
    %237 = vector.shape_cast %236 : vector<1x64x32xf32> to vector<64x32xf32>
    %cst_91 = arith.constant dense<0.000000e+00> : vector<8x32xf32>
    %238 = tpu.matmul %235, %237, %cst_91 {dimension_numbers = #tpu.dot_dimension_numbers<[1], [0], [0], [1], [0, 0, 1, 1], [], []>} : vector<8x64xf32>, vector<64x32xf32>, vector<8x32xf32> -> vector<8x32xf32>
    %239 = arith.addf %230, %238 : vector<8x32xf32>
    %cst_92 = arith.constant dense<0.000000e+00> : vector<8x32xf32>
    %240 = tpu.matmul %26, %239, %cst_92 {dimension_numbers = #tpu.dot_dimension_numbers<[1], [0], [0], [1], [0, 0, 1, 1], [], []>} : vector<8x8xf32>, vector<8x32xf32>, vector<8x32xf32> -> vector<8x32xf32>
    %241 = arith.subf %239, %240 : vector<8x32xf32>
    %cst_93 = arith.constant dense<0.000000e+00> : vector<8xf32>
    %242 = vector.multi_reduction <add>, %241, %cst_93 [1] : vector<8x32xf32> to vector<8xf32>
    %243 = vector.shape_cast %242 : vector<8xf32> to vector<8x1xf32>
    %cst_94 = arith.constant 3.200000e+01 : f32
    %244 = vector.broadcast %cst_94 : f32 to vector<8x1xf32>
    %245 = arith.divf %243, %244 : vector<8x1xf32>
    %246 = vector.broadcast %245 : vector<8x1xf32> to vector<8x32xf32>
    %247 = arith.subf %241, %246 : vector<8x32xf32>
    %248 = arith.mulf %247, %247 : vector<8x32xf32>
    %cst_95 = arith.constant dense<0.000000e+00> : vector<8xf32>
    %249 = vector.multi_reduction <add>, %248, %cst_95 [1] : vector<8x32xf32> to vector<8xf32>
    %250 = vector.shape_cast %249 : vector<8xf32> to vector<8x1xf32>
    %cst_96 = arith.constant 3.200000e+01 : f32
    %251 = vector.broadcast %cst_96 : f32 to vector<8x1xf32>
    %252 = arith.divf %250, %251 : vector<8x1xf32>
    %253 = vector.broadcast %245 : vector<8x1xf32> to vector<8x32xf32>
    %254 = arith.subf %241, %253 : vector<8x32xf32>
    %cst_97 = arith.constant 9.99999974E-6 : f32
    %255 = vector.broadcast %cst_97 : f32 to vector<8x1xf32>
    %256 = arith.addf %252, %255 : vector<8x1xf32>
    %257 = math.rsqrt %256 : vector<8x1xf32>
    %258 = vector.broadcast %257 : vector<8x1xf32> to vector<8x32xf32>
    %259 = arith.mulf %254, %258 : vector<8x32xf32>
    %c0_98 = arith.constant 0 : index
    %c0_99 = arith.constant 0 : index
    %260 = vector.load %arg11[%c0_98, %c0_99] : memref<1x32xf32, #tpu.memory_space<vmem>>, vector<1x32xf32>
    %261 = vector.broadcast %260 : vector<1x32xf32> to vector<8x32xf32>
    %262 = arith.mulf %259, %261 : vector<8x32xf32>
    %c0_100 = arith.constant 0 : index
    %c0_101 = arith.constant 0 : index
    %263 = vector.load %arg12[%c0_100, %c0_101] : memref<1x32xf32, #tpu.memory_space<vmem>>, vector<1x32xf32>
    %264 = vector.broadcast %263 : vector<1x32xf32> to vector<8x32xf32>
    %265 = arith.addf %262, %264 : vector<8x32xf32>
    %cst_102 = arith.constant dense<0.000000e+00> : vector<32xf32>
    %266 = vector.multi_reduction <add>, %265, %cst_102 [0] : vector<8x32xf32> to vector<32xf32>
    %267 = vector.shape_cast %266 : vector<32xf32> to vector<1x32xf32>
    %cst_103 = arith.constant 8.000000e+00 : f32
    %268 = vector.broadcast %cst_103 : f32 to vector<1x32xf32>
    %269 = arith.divf %267, %268 : vector<1x32xf32>
    %270 = vector.extract_strided_slice %265 {offsets = [7, 0], sizes = [1, 32], strides = [1, 1]} : vector<8x32xf32> to vector<1x32xf32>
    %271 = arith.subf %270, %269 : vector<1x32xf32>
    %c0_104 = arith.constant 0 : index
    %c0_105 = arith.constant 0 : index
    %c0_106 = arith.constant 0 : index
    %272 = vector.load %arg13[%c0_104, %c0_105, %c0_106] : memref<1x1x32xf32, #tpu.memory_space<vmem>>, vector<1x1x32xf32>
    %273 = vector.shape_cast %272 : vector<1x1x32xf32> to vector<1x32xf32>
    %274 = vector.shape_cast %271 : vector<1x32xf32> to vector<1x1x32xf32>
    tpu.vector_store %arg13[%c0_104, %c0_105, %c0_106], %274 {strides = array<i32>} : memref<1x1x32xf32, #tpu.memory_space<vmem>>, vector<1x1x32xf32>,
    return
  }
  func.func @transform_0(%arg0: i32) -> (i32, i32, i32) {
    %c0_i32 = arith.constant 0 : i32
    %c0_i32_0 = arith.constant 0 : i32
    %c0_i32_1 = arith.constant 0 : i32
    return %arg0, %c0_i32, %c0_i32_0 : i32, i32, i32
  }
  func.func @transform_1(%arg0: i32) -> (i32, i32) {
    %c0_i32 = arith.constant 0 : i32
    %c0_i32_0 = arith.constant 0 : i32
    %c0_i32_1 = arith.constant 0 : i32
    return %c0_i32, %c0_i32_0 : i32, i32
  }
  func.func @transform_2(%arg0: i32) -> (i32, i32, i32) {
    %c0_i32 = arith.constant 0 : i32
    %c0_i32_0 = arith.constant 0 : i32
    %c0_i32_1 = arith.constant 0 : i32
    %c0_i32_2 = arith.constant 0 : i32
    return %c0_i32, %c0_i32_0, %c0_i32_1 : i32, i32, i32
  }
  func.func @transform_3(%arg0: i32) -> (i32, i32, i32) {
    %c0_i32 = arith.constant 0 : i32
    %c0_i32_0 = arith.constant 0 : i32
    %c0_i32_1 = arith.constant 0 : i32
    %c0_i32_2 = arith.constant 0 : i32
    return %c0_i32, %c0_i32_0, %c0_i32_1 : i32, i32, i32
  }
  func.func @transform_4(%arg0: i32) -> (i32, i32, i32) {
    %c0_i32 = arith.constant 0 : i32
    %c0_i32_0 = arith.constant 0 : i32
    %c0_i32_1 = arith.constant 0 : i32
    %c0_i32_2 = arith.constant 0 : i32
    return %c0_i32, %c0_i32_0, %c0_i32_1 : i32, i32, i32
  }
  func.func @transform_5(%arg0: i32) -> (i32, i32, i32) {
    %c0_i32 = arith.constant 0 : i32
    %c0_i32_0 = arith.constant 0 : i32
    %c0_i32_1 = arith.constant 0 : i32
    %c0_i32_2 = arith.constant 0 : i32
    return %c0_i32, %c0_i32_0, %c0_i32_1 : i32, i32, i32
  }
  func.func @transform_6(%arg0: i32) -> (i32, i32, i32) {
    %c0_i32 = arith.constant 0 : i32
    %c0_i32_0 = arith.constant 0 : i32
    %c0_i32_1 = arith.constant 0 : i32
    %c0_i32_2 = arith.constant 0 : i32
    return %c0_i32, %c0_i32_0, %c0_i32_1 : i32, i32, i32
  }
  func.func @transform_7(%arg0: i32) -> (i32, i32, i32) {
    %c0_i32 = arith.constant 0 : i32
    %c0_i32_0 = arith.constant 0 : i32
    %c0_i32_1 = arith.constant 0 : i32
    %c0_i32_2 = arith.constant 0 : i32
    return %c0_i32, %c0_i32_0, %c0_i32_1 : i32, i32, i32
  }
  func.func @transform_8(%arg0: i32) -> (i32, i32) {
    %c0_i32 = arith.constant 0 : i32
    %c0_i32_0 = arith.constant 0 : i32
    %c0_i32_1 = arith.constant 0 : i32
    return %c0_i32, %c0_i32_0 : i32, i32
  }
  func.func @transform_9(%arg0: i32) -> (i32, i32) {
    %c0_i32 = arith.constant 0 : i32
    %c0_i32_0 = arith.constant 0 : i32
    %c0_i32_1 = arith.constant 0 : i32
    return %c0_i32, %c0_i32_0 : i32, i32
  }
  func.func @transform_10(%arg0: i32) -> (i32, i32) {
    %c0_i32 = arith.constant 0 : i32
    %c0_i32_0 = arith.constant 0 : i32
    %c0_i32_1 = arith.constant 0 : i32
    return %c0_i32, %c0_i32_0 : i32, i32
  }
  func.func @transform_11(%arg0: i32) -> (i32, i32) {
    %c0_i32 = arith.constant 0 : i32
    %c0_i32_0 = arith.constant 0 : i32
    %c0_i32_1 = arith.constant 0 : i32
    return %c0_i32, %c0_i32_0 : i32, i32
  }
  func.func @transform_12(%arg0: i32) -> (i32, i32, i32) {
    %c0_i32 = arith.constant 0 : i32
    %c0_i32_0 = arith.constant 0 : i32
    %c0_i32_1 = arith.constant 0 : i32
    return %arg0, %c0_i32, %c0_i32_0 : i32, i32, i32
  }
}

</mosaic_0001>

<llo_original>
// kernel: tpu_custom_call.1
$region0: #{tpu_custom_call.1}
  #allocation0 [shape = 'u32[]', space=smem, size = 0x4, offset = 0x4, fixed_abs, tag = 'smem constant byte address 0x4 - core index']
  #allocation1 [shape = 'u32[144,128]{1,0:T(1,128)}', space=vmem, size = 0x12000, scoped, tag = 'internal scratch']
  %s0 = inlined_call_operand.vmem [shape: f32[2,8,8], index: 0, kind: input, shape index: {}]
  %s1 = inlined_call_operand.vmem [shape: f32[16,32], index: 1, kind: input, shape index: {}]
  %s2 = inlined_call_operand.vmem [shape: f32[2,32,96], index: 2, kind: input, shape index: {}]
  %s3 = inlined_call_operand.vmem [shape: f32[2,1,96], index: 3, kind: input, shape index: {}]
  %s4 = inlined_call_operand.vmem [shape: f32[2,32,32], index: 4, kind: input, shape index: {}]
  %s5 = inlined_call_operand.hbm [shape: f32[2,1,32], index: 5, kind: input, shape index: {}]
  %s6 = inlined_call_operand.vmem [shape: f32[2,32,64], index: 6, kind: input, shape index: {}]
  %s7 = inlined_call_operand.vmem [shape: f32[2,64,32], index: 7, kind: input, shape index: {}]
  %s8 = inlined_call_operand.vmem [shape: f32[64,8], index: 8, kind: input, shape index: {}]
  %s9 = inlined_call_operand.vmem [shape: f32[8,8], index: 9, kind: input, shape index: {}]
  %s10 = inlined_call_operand.vmem [shape: f32[1,32], index: 10, kind: input, shape index: {}]
  %s11 = inlined_call_operand.vmem [shape: f32[1,32], index: 11, kind: input, shape index: {}]
  %s12 = inlined_call_operand.hbm [shape: f32[2,1,32], index: 12, kind: output, shape index: {}]
  %s13 = sld [smem:[#allocation0]]
  $region85: #{tpu_custom_call.1} parent=0
    _
  %s15 = ssub.s32 1, %s13
  %s16 = scalar_select 0, %s15, %s13
  $region1: #{tpu_custom_call.1} parent=0
    #allocation2 [shape = 'u8[1024]{0}', space=vmem, size = 0x400, scoped, tag = 'input window, operand 5, single buffered']
    #allocation3 [shape = 's32[2]{0}', space=sflag, size = 0x8, scoped, tag = 'scoped memory for tpu_custom_call.1']
    #allocation4 [shape = 's32[2]{0}', space=sflag, size = 0x8, scoped, tag = 'scoped memory for tpu_custom_call.1']
    #allocation5 [shape = 'u8[1024]{0}', space=vmem, size = 0x400, scoped, tag = 'output window, operand 0']
    %17 = vsyncpa [#allocation3], 0
    %18 = vsyncpa [#allocation4], 0
    %s19 = scalar_lea.sflag [#allocation4], 1
    %20 = vsyncpa %s19, 0
    loop: start=0, step=1, limit=4
    $region2: #{tpu_custom_call.1} parent=1 // loop_pre_header
      _
    $region3: #{tpu_custom_call.1} parent=1 // loop_header
      %s22 = sphi 0, %s26
      %p23 = scmp.ge.s32.totalorder %s22, 4
      %s32 = sphi 0, %s34
      %s35 = sphi 0, %s32
      %s36 = sphi 0, %s35
      %s52 = sphi 0, %s36
      %s56 = sphi 0, %s56
      %s58 = sphi 0, %s56
      %s59 = sphi 0, %s58
      %s73 = sphi 0, %s59
      %s77 = sphi 0, %s77
      %s79 = sphi 0, %s77
      %s80 = sphi 0, %s79
      %s94 = sphi 0, %s80
      %s98 = sphi 0, %s98
      %s100 = sphi 0, %s98
      %s101 = sphi 0, %s100
      %s115 = sphi 0, %s101
      %s119 = sphi 0, %s119
      %s121 = sphi 0, %s119
      %s122 = sphi 0, %s121
      %s136 = sphi 0, %s122
      %s140 = sphi 0, %s140
      %s142 = sphi 0, %s140
      %s143 = sphi 0, %s142
      %s157 = sphi 0, %s143
      %s161 = sphi 0, %s161
      %s163 = sphi 0, %s161
      %s164 = sphi 0, %s163
      %s178 = sphi 0, %s164
      %s182 = sphi 0, %s182
      %s184 = sphi 0, %s182
      %s185 = sphi 0, %s184
      %s199 = sphi 0, %s185
      %s203 = sphi 0, %s203
      %s205 = sphi 0, %s203
      %s206 = sphi 0, %s205
      %s220 = sphi 0, %s206
      %s224 = sphi 0, %s224
      %s226 = sphi 0, %s224
      %s227 = sphi 0, %s226
      %s241 = sphi 0, %s227
      %s245 = sphi 0, %s245
      %s247 = sphi 0, %s245
      %s248 = sphi 0, %s247
      %s262 = sphi 0, %s248
      %s266 = sphi 0, %s266
      %s268 = sphi 0, %s266
      %s269 = sphi 0, %s268
      %s283 = sphi 0, %s269
      %s289 = sphi 0, %s291
      %s292 = sphi 0, %s289
      %s293 = sphi 0, %s292
      %s309 = sphi 0, %s293
    $region4: #{tpu_custom_call.1} parent=1 // loop_header_branch
      %25 = sbr.rel (%p23) target = $region8
    $region5: #{tpu_custom_call.1} parent=1 // loop_body
      %s27 = ssub.s32 %s22, 1
      %s28 = ssub.s32 %s22, 2
      %s29 = sadd.s32 %s22, 1
      %s30 = ssub.s32 %s22, %s29
      %p31 = scmp.eq.s32.totalorder %s30, 0
      %s33 = sadd.s32 %s32, 1
      %s34 = scalar_select %p31, %s32, %s33
      %p37 = pneg %p31
      %p38 = scmp.eq.s32.totalorder %s22, 1
      %p39 = por %p37, %p38
      %p40 = scmp.ne.s32.totalorder %s32, %s35
      %p41 = scmp.eq.s32.totalorder %s22, 0
      %p42 = por %p40, %p41
      %p43 = scmp.ne.s32.totalorder %s32, %s35
      %p44 = scmp.eq.s32.totalorder %s27, 1
      %p45 = por %p43, %p44
      %p46 = scmp.ne.s32.totalorder %s35, %s36
      %p47 = scmp.eq.s32.totalorder %s27, 0
      %p48 = por %p46, %p47
      %p49 = scmp.ne.s32.totalorder %s35, %s36
      %p50 = scmp.eq.s32.totalorder %s28, 1
      %p51 = por %p49, %p50
      %p53 = scmp.ne.s32.totalorder %s36, %s52
      %p54 = scmp.eq.s32.totalorder %s28, 0
      %p55 = por %p53, %p54
      %s57 = sadd.s32 %s56, 1
      %p60 = scmp.eq.s32.totalorder %s22, 1
      %p61 = scmp.ne.s32.totalorder %s56, %s58
      %p62 = scmp.eq.s32.totalorder %s22, 0
      %p63 = por %p61, %p62
      %p64 = scmp.ne.s32.totalorder %s56, %s58
      %p65 = scmp.eq.s32.totalorder %s27, 1
      %p66 = por %p64, %p65
      %p67 = scmp.ne.s32.totalorder %s58, %s59
      %p68 = scmp.eq.s32.totalorder %s27, 0
      %p69 = por %p67, %p68
      %p70 = scmp.ne.s32.totalorder %s58, %s59
      %p71 = scmp.eq.s32.totalorder %s28, 1
      %p72 = por %p70, %p71
      %p74 = scmp.ne.s32.totalorder %s59, %s73
      %p75 = scmp.eq.s32.totalorder %s28, 0
      %p76 = por %p74, %p75
      %s78 = sadd.s32 %s77, 1
      %p81 = scmp.eq.s32.totalorder %s22, 1
      %p82 = scmp.ne.s32.totalorder %s77, %s79
      %p83 = scmp.eq.s32.totalorder %s22, 0
      %p84 = por %p82, %p83
      %p85 = scmp.ne.s32.totalorder %s77, %s79
      %p86 = scmp.eq.s32.totalorder %s27, 1
      %p87 = por %p85, %p86
      %p88 = scmp.ne.s32.totalorder %s79, %s80
      %p89 = scmp.eq.s32.totalorder %s27, 0
      %p90 = por %p88, %p89
      %p91 = scmp.ne.s32.totalorder %s79, %s80
      %p92 = scmp.eq.s32.totalorder %s28, 1
      %p93 = por %p91, %p92
      %p95 = scmp.ne.s32.totalorder %s80, %s94
      %p96 = scmp.eq.s32.totalorder %s28, 0
      %p97 = por %p95, %p96
      %s99 = sadd.s32 %s98, 1
      %p102 = scmp.eq.s32.totalorder %s22, 1
      %p103 = scmp.ne.s32.totalorder %s98, %s100
      %p104 = scmp.eq.s32.totalorder %s22, 0
      %p105 = por %p103, %p104
      %p106 = scmp.ne.s32.totalorder %s98, %s100
      %p107 = scmp.eq.s32.totalorder %s27, 1
      %p108 = por %p106, %p107
      %p109 = scmp.ne.s32.totalorder %s100, %s101
      %p110 = scmp.eq.s32.totalorder %s27, 0
      %p111 = por %p109, %p110
      %p112 = scmp.ne.s32.totalorder %s100, %s101
      %p113 = scmp.eq.s32.totalorder %s28, 1
      %p114 = por %p112, %p113
      %p116 = scmp.ne.s32.totalorder %s101, %s115
      %p117 = scmp.eq.s32.totalorder %s28, 0
      %p118 = por %p116, %p117
      %s120 = sadd.s32 %s119, 1
      %p123 = scmp.eq.s32.totalorder %s22, 1
      %p124 = scmp.ne.s32.totalorder %s119, %s121
      %p125 = scmp.eq.s32.totalorder %s22, 0
      %p126 = por %p124, %p125
      %p127 = scmp.ne.s32.totalorder %s119, %s121
      %p128 = scmp.eq.s32.totalorder %s27, 1
      %p129 = por %p127, %p128
      %p130 = scmp.ne.s32.totalorder %s121, %s122
      %p131 = scmp.eq.s32.totalorder %s27, 0
      %p132 = por %p130, %p131
      %p133 = scmp.ne.s32.totalorder %s121, %s122
      %p134 = scmp.eq.s32.totalorder %s28, 1
      %p135 = por %p133, %p134
      %p137 = scmp.ne.s32.totalorder %s122, %s136
      %p138 = scmp.eq.s32.totalorder %s28, 0
      %p139 = por %p137, %p138
      %s141 = sadd.s32 %s140, 1
      %p144 = scmp.eq.s32.totalorder %s22, 1
      %p145 = scmp.ne.s32.totalorder %s140, %s142
      %p146 = scmp.eq.s32.totalorder %s22, 0
      %p147 = por %p145, %p146
      %p148 = scmp.ne.s32.totalorder %s140, %s142
      %p149 = scmp.eq.s32.totalorder %s27, 1
      %p150 = por %p148, %p149
      %p151 = scmp.ne.s32.totalorder %s142, %s143
      %p152 = scmp.eq.s32.totalorder %s27, 0
      %p153 = por %p151, %p152
      %p154 = scmp.ne.s32.totalorder %s142, %s143
      %p155 = scmp.eq.s32.totalorder %s28, 1
      %p156 = por %p154, %p155
      %p158 = scmp.ne.s32.totalorder %s143, %s157
      %p159 = scmp.eq.s32.totalorder %s28, 0
      %p160 = por %p158, %p159
      %s162 = sadd.s32 %s161, 1
      %p165 = scmp.eq.s32.totalorder %s22, 1
      %p166 = scmp.ne.s32.totalorder %s161, %s163
      %p167 = scmp.eq.s32.totalorder %s22, 0
      %p168 = por %p166, %p167
      %p169 = scmp.ne.s32.totalorder %s161, %s163
      %p170 = scmp.eq.s32.totalorder %s27, 1
      %p171 = por %p169, %p170
      %p172 = scmp.ne.s32.totalorder %s163, %s164
      %p173 = scmp.eq.s32.totalorder %s27, 0
      %p174 = por %p172, %p173
      %p175 = scmp.ne.s32.totalorder %s163, %s164
      %p176 = scmp.eq.s32.totalorder %s28, 1
      %p177 = por %p175, %p176
      %p179 = scmp.ne.s32.totalorder %s164, %s178
      %p180 = scmp.eq.s32.totalorder %s28, 0
      %p181 = por %p179, %p180
      %s183 = sadd.s32 %s182, 1
      %p186 = scmp.eq.s32.totalorder %s22, 1
      %p187 = scmp.ne.s32.totalorder %s182, %s184
      %p188 = scmp.eq.s32.totalorder %s22, 0
      %p189 = por %p187, %p188
      %p190 = scmp.ne.s32.totalorder %s182, %s184
      %p191 = scmp.eq.s32.totalorder %s27, 1
      %p192 = por %p190, %p191
      %p193 = scmp.ne.s32.totalorder %s184, %s185
      %p194 = scmp.eq.s32.totalorder %s27, 0
      %p195 = por %p193, %p194
      %p196 = scmp.ne.s32.totalorder %s184, %s185
      %p197 = scmp.eq.s32.totalorder %s28, 1
      %p198 = por %p196, %p197
      %p200 = scmp.ne.s32.totalorder %s185, %s199
      %p201 = scmp.eq.s32.totalorder %s28, 0
      %p202 = por %p200, %p201
      %s204 = sadd.s32 %s203, 1
      %p207 = scmp.eq.s32.totalorder %s22, 1
      %p208 = scmp.ne.s32.totalorder %s203, %s205
      %p209 = scmp.eq.s32.totalorder %s22, 0
      %p210 = por %p208, %p209
      %p211 = scmp.ne.s32.totalorder %s203, %s205
      %p212 = scmp.eq.s32.totalorder %s27, 1
      %p213 = por %p211, %p212
      %p214 = scmp.ne.s32.totalorder %s205, %s206
      %p215 = scmp.eq.s32.totalorder %s27, 0
      %p216 = por %p214, %p215
      %p217 = scmp.ne.s32.totalorder %s205, %s206
      %p218 = scmp.eq.s32.totalorder %s28, 1
      %p219 = por %p217, %p218
      %p221 = scmp.ne.s32.totalorder %s206, %s220
      %p222 = scmp.eq.s32.totalorder %s28, 0
      %p223 = por %p221, %p222
      %s225 = sadd.s32 %s224, 1
      %p228 = scmp.eq.s32.totalorder %s22, 1
      %p229 = scmp.ne.s32.totalorder %s224, %s226
      %p230 = scmp.eq.s32.totalorder %s22, 0
      %p231 = por %p229, %p230
      %p232 = scmp.ne.s32.totalorder %s224, %s226
      %p233 = scmp.eq.s32.totalorder %s27, 1
      %p234 = por %p232, %p233
      %p235 = scmp.ne.s32.totalorder %s226, %s227
      %p236 = scmp.eq.s32.totalorder %s27, 0
      %p237 = por %p235, %p236
      %p238 = scmp.ne.s32.totalorder %s226, %s227
      %p239 = scmp.eq.s32.totalorder %s28, 1
      %p240 = por %p238, %p239
      %p242 = scmp.ne.s32.totalorder %s227, %s241
      %p243 = scmp.eq.s32.totalorder %s28, 0
      %p244 = por %p242, %p243
      %s246 = sadd.s32 %s245, 1
      %p249 = scmp.eq.s32.totalorder %s22, 1
      %p250 = scmp.ne.s32.totalorder %s245, %s247
      %p251 = scmp.eq.s32.totalorder %s22, 0
      %p252 = por %p250, %p251
      %p253 = scmp.ne.s32.totalorder %s245, %s247
      %p254 = scmp.eq.s32.totalorder %s27, 1
      %p255 = por %p253, %p254
      %p256 = scmp.ne.s32.totalorder %s247, %s248
      %p257 = scmp.eq.s32.totalorder %s27, 0
      %p258 = por %p256, %p257
      %p259 = scmp.ne.s32.totalorder %s247, %s248
      %p260 = scmp.eq.s32.totalorder %s28, 1
      %p261 = por %p259, %p260
      %p263 = scmp.ne.s32.totalorder %s248, %s262
      %p264 = scmp.eq.s32.totalorder %s28, 0
      %p265 = por %p263, %p264
      %s267 = sadd.s32 %s266, 1
      %p270 = scmp.eq.s32.totalorder %s22, 1
      %p271 = scmp.ne.s32.totalorder %s266, %s268
      %p272 = scmp.eq.s32.totalorder %s22, 0
      %p273 = por %p271, %p272
      %p274 = scmp.ne.s32.totalorder %s266, %s268
      %p275 = scmp.eq.s32.totalorder %s27, 1
      %p276 = por %p274, %p275
      %p277 = scmp.ne.s32.totalorder %s268, %s269
      %p278 = scmp.eq.s32.totalorder %s27, 0
      %p279 = por %p277, %p278
      %p280 = scmp.ne.s32.totalorder %s268, %s269
      %p281 = scmp.eq.s32.totalorder %s28, 1
      %p282 = por %p280, %p281
      %p284 = scmp.ne.s32.totalorder %s269, %s283
      %p285 = scmp.eq.s32.totalorder %s28, 0
      %p286 = por %p284, %p285
      %s287 = ssub.s32 %s22, %s29
      %p288 = scmp.eq.s32.totalorder %s287, 0
      %s290 = sadd.s32 %s289, 1
      %s291 = scalar_select %p288, %s289, %s290
      %p294 = pneg %p288
      %p295 = scmp.eq.s32.totalorder %s22, 1
      %p296 = por %p294, %p295
      %p297 = scmp.ne.s32.totalorder %s289, %s292
      %p298 = scmp.eq.s32.totalorder %s22, 0
      %p299 = por %p297, %p298
      %p300 = scmp.ne.s32.totalorder %s289, %s292
      %p301 = scmp.eq.s32.totalorder %s27, 1
      %p302 = por %p300, %p301
      %p303 = scmp.ne.s32.totalorder %s292, %s293
      %p304 = scmp.eq.s32.totalorder %s27, 0
      %p305 = por %p303, %p304
      %p306 = scmp.ne.s32.totalorder %s292, %s293
      %p307 = scmp.eq.s32.totalorder %s28, 1
      %p308 = por %p306, %p307
      %p310 = scmp.ne.s32.totalorder %s293, %s309
      %p311 = scmp.eq.s32.totalorder %s28, 0
      %p312 = por %p310, %p311
      %p313 = scmp.le.s32.totalorder 1, %s22
      %p314 = scmp.lt.s32.totalorder %s22, 3
      %p315 = pnand %p313, %p314
      %p316 = pneg %p315
      // Predicated region
      $region9: #{tpu_custom_call.1} parent=5 // pred_check
        _
      $region10: #{tpu_custom_call.1} parent=5 // pred_check_branch
        %318 = sbr.rel (%p315) target = $region12
      $region11: #{tpu_custom_call.1} parent=5 // pred_region
        %s319 = ssub.s32 %s22, 1
        // Predicated region
        $region13: #{tpu_custom_call.1} parent=11 // pred_check
          %p320 = pneg %p69
        $region14: #{tpu_custom_call.1} parent=11 // pred_check_branch
          %322 = sbr.rel (%p320) target = $region16
        $region15: #{tpu_custom_call.1} parent=11 // pred_region
          _
        $region16: #{tpu_custom_call.1} parent=11 // pred_fallthru
          _
        // Predicated region
        $region17: #{tpu_custom_call.1} parent=11 // pred_check
          %p323 = pneg %p90
        $region18: #{tpu_custom_call.1} parent=11 // pred_check_branch
          %325 = sbr.rel (%p323) target = $region20
        $region19: #{tpu_custom_call.1} parent=11 // pred_region
          _
        $region20: #{tpu_custom_call.1} parent=11 // pred_fallthru
          _
        // Predicated region
        $region21: #{tpu_custom_call.1} parent=11 // pred_check
          %p326 = pneg %p111
        $region22: #{tpu_custom_call.1} parent=11 // pred_check_branch
          %328 = sbr.rel (%p326) target = $region24
        $region23: #{tpu_custom_call.1} parent=11 // pred_region
          _
        $region24: #{tpu_custom_call.1} parent=11 // pred_fallthru
          _
        // Predicated region
        $region25: #{tpu_custom_call.1} parent=11 // pred_check
          %p329 = pneg %p132
        $region26: #{tpu_custom_call.1} parent=11 // pred_check_branch
          %331 = sbr.rel (%p329) target = $region28
        $region27: #{tpu_custom_call.1} parent=11 // pred_region
          _
        $region28: #{tpu_custom_call.1} parent=11 // pred_fallthru
          _
        // Predicated region
        $region29: #{tpu_custom_call.1} parent=11 // pred_check
          %p332 = pneg %p153
        $region30: #{tpu_custom_call.1} parent=11 // pred_check_branch
          %334 = sbr.rel (%p332) target = $region32
        $region31: #{tpu_custom_call.1} parent=11 // pred_region
          %s336 = ssub.s32 32, 32
          %337 = vsyncadd [#allocation3], %s336
          %s338 = sshll.u32 [#allocation2], 4
          %s339 = int_to_ptr.vmem [resolvable:$true] %s338
          %344 = dma.hbm_to_vmem [thread:$0]  %s5, 32, %s339, [#allocation3], 16, 16, 1
        $region32: #{tpu_custom_call.1} parent=11 // pred_fallthru
          _
        // Predicated region
        $region33: #{tpu_custom_call.1} parent=11 // pred_check
          %p345 = pneg %p174
        $region34: #{tpu_custom_call.1} parent=11 // pred_check_branch
          %347 = sbr.rel (%p345) target = $region36
        $region35: #{tpu_custom_call.1} parent=11 // pred_region
          _
        $region36: #{tpu_custom_call.1} parent=11 // pred_fallthru
          _
        // Predicated region
        $region37: #{tpu_custom_call.1} parent=11 // pred_check
          %p348 = pneg %p195
        $region38: #{tpu_custom_call.1} parent=11 // pred_check_branch
          %350 = sbr.rel (%p348) target = $region40
        $region39: #{tpu_custom_call.1} parent=11 // pred_region
          _
        $region40: #{tpu_custom_call.1} parent=11 // pred_fallthru
          _
        // Predicated region
        $region41: #{tpu_custom_call.1} parent=11 // pred_check
          %p351 = pneg %p216
        $region42: #{tpu_custom_call.1} parent=11 // pred_check_branch
          %353 = sbr.rel (%p351) target = $region44
        $region43: #{tpu_custom_call.1} parent=11 // pred_region
          _
        $region44: #{tpu_custom_call.1} parent=11 // pred_fallthru
          _
        // Predicated region
        $region45: #{tpu_custom_call.1} parent=11 // pred_check
          %p354 = pneg %p237
        $region46: #{tpu_custom_call.1} parent=11 // pred_check_branch
          %356 = sbr.rel (%p354) target = $region48
        $region47: #{tpu_custom_call.1} parent=11 // pred_region
          _
        $region48: #{tpu_custom_call.1} parent=11 // pred_fallthru
          _
        // Predicated region
        $region49: #{tpu_custom_call.1} parent=11 // pred_check
          %p357 = pneg %p258
        $region50: #{tpu_custom_call.1} parent=11 // pred_check_branch
          %359 = sbr.rel (%p357) target = $region52
        $region51: #{tpu_custom_call.1} parent=11 // pred_region
          _
        $region52: #{tpu_custom_call.1} parent=11 // pred_fallthru
          _
        // Predicated region
        $region53: #{tpu_custom_call.1} parent=11 // pred_check
          %p360 = pneg %p279
        $region54: #{tpu_custom_call.1} parent=11 // pred_check_branch
          %362 = sbr.rel (%p360) target = $region56
        $region55: #{tpu_custom_call.1} parent=11 // pred_region
          _
        $region56: #{tpu_custom_call.1} parent=11 // pred_fallthru
          _
      $region12: #{tpu_custom_call.1} parent=5 // pred_fallthru
        _
      %p363 = scmp.lt.s32.totalorder %s22, 2
      // Predicated region
      $region57: #{tpu_custom_call.1} parent=5 // pred_check
        %p364 = pneg %p363
      $region58: #{tpu_custom_call.1} parent=5 // pred_check_branch
        %366 = sbr.rel (%p364) target = $region60
      $region59: #{tpu_custom_call.1} parent=5 // pred_region
        // Predicated region
        $region61: #{tpu_custom_call.1} parent=59 // pred_check
          %p367 = pneg %p42
        $region62: #{tpu_custom_call.1} parent=59 // pred_check_branch
          %369 = sbr.rel (%p367) target = $region64
        $region63: #{tpu_custom_call.1} parent=59 // pred_region
          %p370 = scmp.lt.s32.totalorder %s22, 1
          %s371 = scalar_select %p370, %s22, 1
          %s372 = smul.addr %s371, 8
          %s373 = scalar_lea.vmem %s0, %s372
        $region64: #{tpu_custom_call.1} parent=59 // pred_fallthru
          _
      $region60: #{tpu_custom_call.1} parent=5 // pred_fallthru
        _
      %p374 = scmp.le.s32.totalorder 1, %s22
      %p375 = scmp.lt.s32.totalorder %s22, 3
      %p376 = pnand %p374, %p375
      %p377 = pneg %p376
      // Predicated region
      $region65: #{tpu_custom_call.1} parent=5 // pred_check
        _
      $region66: #{tpu_custom_call.1} parent=5 // pred_check_branch
        %379 = sbr.rel (%p376) target = $region68
      $region67: #{tpu_custom_call.1} parent=5 // pred_region
        %s380 = ssub.s32 %s22, 1
        // Predicated region
        $region69: #{tpu_custom_call.1} parent=67 // pred_check
          %p381 = pneg %p153
        $region70: #{tpu_custom_call.1} parent=67 // pred_check_branch
          %383 = sbr.rel (%p381) target = $region72
        $region71: #{tpu_custom_call.1} parent=67 // pred_region
          %384 = dma.done [#allocation3], 32
        $region72: #{tpu_custom_call.1} parent=67 // pred_fallthru
          _
        %p385 = scmp.lt.s32.totalorder %s27, 1
        %s386 = scalar_select %p385, %s27, 1
        %s387 = smul.addr %s386, 8
        %s388 = scalar_lea.vmem %s0, %s387
        %p389 = pneg %p48
        %p390 = pneg %p45
        %p391 = pneg %p69
        %p392 = pneg %p66
        %p393 = pneg %p90
        %p394 = pneg %p87
        %p395 = pneg %p111
        %p396 = pneg %p108
        %p397 = pneg %p132
        %p398 = pneg %p129
        %p399 = pneg %p153
        %p400 = pneg %p150
        %p401 = pneg %p174
        %p402 = pneg %p171
        %p403 = pneg %p195
        %p404 = pneg %p192
        %p405 = pneg %p216
        %p406 = pneg %p213
        %p407 = pneg %p237
        %p408 = pneg %p234
        %p409 = pneg %p258
        %p410 = pneg %p255
        %p411 = pneg %p279
        %p412 = pneg %p276
        %p413 = pneg %p305
        %p414 = pneg %p302
        %s415 = sand.u32 %s292, 1
        %s416 = scalar_lea.sflag [#allocation4], %s415
        %s417 = sand.u32 %s292, 1
        %s418 = scalar_lea.vmem [#allocation5], %s417
        %p419 = scmp.lt.s32.totalorder %s27, 1
        %s420 = scalar_select %p419, %s27, 1
        %s421 = smul.addr %s420, 8
        %s422 = scalar_lea.vmem %s0, %s421
        %v423 = vld [vmem:[%s422] sm:$0xff]
        %v424 = vlaneseq
        %v425 = vshrl.u32 %v424, 7
        %v426 = vlaneseq
        %v427 = vand.u32 %v426, 127
        %v428 = vadd.s32 %v425, 7
        %v429 = vand.u32 %v428, 7
        %vm430 = vcmp.eq.s32.totalorder %v427, %v429
        %v431 = vsel %vm430, 1, 0
        %v432 = vcvt.s32.f32 %v431
        %v433 = vadd.s32 %v425, 1
        %v434 = vand.u32 %v433, 7
        %vm435 = vcmp.eq.s32.totalorder %v427, %v434
        %v436 = vsel %vm435, 1, 0
        %v437 = vcvt.s32.f32 %v436
        %vm438 = vcmask 64512
        %v440 = vsel %vm438, %v432, 0
        %442 = vmatprep.subr.mxu0 0.0
        %443 = vmatpush1.msra.mxu0 %v423
        %444 = vmatprep.subr.mxu0 0.0
        %445 = vmatpush1.msra.mxu0 0.0
        %446 = vmatprep.subr.mxu0 0.0
        %447 = vmatpush1.msra.mxu0 0.0
        %448 = vmatprep.subr.mxu0 0.0
        %449 = vmatpush1.msra.mxu0 0.0
        %450 = vmatprep.subr.mxu0 0.0
        %451 = vmatpush1.msra.mxu0 0.0
        %452 = vmatprep.subr.mxu0 0.0
        %453 = vmatpush1.msra.mxu0 0.0
        %454 = vmatprep.subr.mxu0 0.0
        %455 = vmatpush1.msra.mxu0 0.0
        %456 = vmatprep.subr.mxu0 0.0
        %457 = vmatpush1.msra.mxu0 0.0
        %458 = vmatprep.subr.mxu0 0.0
        %459 = vmatpush1.msra.mxu0 0.0
        %460 = vmatprep.subr.mxu0 0.0
        %461 = vmatpush1.msra.mxu0 0.0
        %462 = vmatprep.subr.mxu0 0.0
        %463 = vmatpush1.msra.mxu0 0.0
        %464 = vmatprep.subr.mxu0 0.0
        %465 = vmatpush1.msra.mxu0 0.0
        %466 = vmatprep.subr.mxu0 0.0
        %467 = vmatpush1.msra.mxu0 0.0
        %468 = vmatprep.subr.mxu0 0.0
        %469 = vmatpush1.msra.mxu0 0.0
        %470 = vmatprep.subr.mxu0 0.0
        %471 = vmatpush1.msra.mxu0 0.0
        %472 = vmatprep.subr.mxu0 0.0
        %473 = vmatpush1.msra.mxu0 0.0
        %474 = vmatprep.subr.mxu0 0.0
        %475 = vmatpush1.msra.mxu0 0.0
        %476 = vmatprep.subr.mxu0 0.0
        %477 = vmatpush1.msra.mxu0 0.0
        %478 = vmatprep.subr.mxu0 0.0
        %479 = vmatpush1.msra.mxu0 0.0
        %480 = vmatprep.subr.mxu0 0.0
        %481 = vmatpush1.msra.mxu0 0.0
        %482 = vmatprep.subr.mxu0 0.0
        %483 = vmatpush1.msra.mxu0 0.0
        %484 = vmatprep.subr.mxu0 0.0
        %485 = vmatpush1.msra.mxu0 0.0
        %486 = vmatprep.subr.mxu0 0.0
        %487 = vmatpush1.msra.mxu0 0.0
        %488 = vmatprep.subr.mxu0 0.0
        %489 = vmatpush1.msra.mxu0 0.0
        %490 = vmatprep.subr.mxu0 0.0
        %491 = vmatpush1.msra.mxu0 0.0
        %492 = vmatprep.subr.mxu0 0.0
        %493 = vmatpush1.msra.mxu0 0.0
        %494 = vmatprep.subr.mxu0 0.0
        %495 = vmatpush1.msra.mxu0 0.0
        %496 = vmatprep.subr.mxu0 0.0
        %497 = vmatpush1.msra.mxu0 0.0
        %498 = vmatprep.subr.mxu0 0.0
        %499 = vmatpush1.msra.mxu0 0.0
        %500 = vmatprep.subr.mxu0 0.0
        %501 = vmatpush1.msra.mxu0 0.0
        %502 = vmatprep.subr.mxu0 0.0
        %503 = vmatpush1.msra.mxu0 0.0
        %504 = vmatprep.subr.mxu0 0.0
        %505 = vmatpush1.msra.mxu0 0.0
        %506 = vmatprep.mubr.f32.mxu0 0.0
        %507 = vmatmul.mubr.f32.gmra.mrb[0].mxu0 %v440
        %v508 = vpop.f32.mrb[0].mxu0
        %v509 = vadd.f32 0.0, %v508
        %v510 = vpop.f32.mrb[0].mxu0
        %511 = vdwg.mxu0
        %v513 = vsel %vm438, %v437, 0
        %515 = vmatprep.subr.mxu0 0.0
        %516 = vmatpush1.msra.mxu0 %v423
        %517 = vmatprep.subr.mxu0 0.0
        %518 = vmatpush1.msra.mxu0 0.0
        %519 = vmatprep.subr.mxu0 0.0
        %520 = vmatpush1.msra.mxu0 0.0
        %521 = vmatprep.subr.mxu0 0.0
        %522 = vmatpush1.msra.mxu0 0.0
        %523 = vmatprep.subr.mxu0 0.0
        %524 = vmatpush1.msra.mxu0 0.0
        %525 = vmatprep.subr.mxu0 0.0
        %526 = vmatpush1.msra.mxu0 0.0
        %527 = vmatprep.subr.mxu0 0.0
        %528 = vmatpush1.msra.mxu0 0.0
        %529 = vmatprep.subr.mxu0 0.0
        %530 = vmatpush1.msra.mxu0 0.0
        %531 = vmatprep.subr.mxu0 0.0
        %532 = vmatpush1.msra.mxu0 0.0
        %533 = vmatprep.subr.mxu0 0.0
        %534 = vmatpush1.msra.mxu0 0.0
        %535 = vmatprep.subr.mxu0 0.0
        %536 = vmatpush1.msra.mxu0 0.0
        %537 = vmatprep.subr.mxu0 0.0
        %538 = vmatpush1.msra.mxu0 0.0
        %539 = vmatprep.subr.mxu0 0.0
        %540 = vmatpush1.msra.mxu0 0.0
        %541 = vmatprep.subr.mxu0 0.0
        %542 = vmatpush1.msra.mxu0 0.0
        %543 = vmatprep.subr.mxu0 0.0
        %544 = vmatpush1.msra.mxu0 0.0
        %545 = vmatprep.subr.mxu0 0.0
        %546 = vmatpush1.msra.mxu0 0.0
        %547 = vmatprep.subr.mxu0 0.0
        %548 = vmatpush1.msra.mxu0 0.0
        %549 = vmatprep.subr.mxu0 0.0
        %550 = vmatpush1.msra.mxu0 0.0
        %551 = vmatprep.subr.mxu0 0.0
        %552 = vmatpush1.msra.mxu0 0.0
        %553 = vmatprep.subr.mxu0 0.0
        %554 = vmatpush1.msra.mxu0 0.0
        %555 = vmatprep.subr.mxu0 0.0
        %556 = vmatpush1.msra.mxu0 0.0
        %557 = vmatprep.subr.mxu0 0.0
        %558 = vmatpush1.msra.mxu0 0.0
        %559 = vmatprep.subr.mxu0 0.0
        %560 = vmatpush1.msra.mxu0 0.0
        %561 = vmatprep.subr.mxu0 0.0
        %562 = vmatpush1.msra.mxu0 0.0
        %563 = vmatprep.subr.mxu0 0.0
        %564 = vmatpush1.msra.mxu0 0.0
        %565 = vmatprep.subr.mxu0 0.0
        %566 = vmatpush1.msra.mxu0 0.0
        %567 = vmatprep.subr.mxu0 0.0
        %568 = vmatpush1.msra.mxu0 0.0
        %569 = vmatprep.subr.mxu0 0.0
        %570 = vmatpush1.msra.mxu0 0.0
        %571 = vmatprep.subr.mxu0 0.0
        %572 = vmatpush1.msra.mxu0 0.0
        %573 = vmatprep.subr.mxu0 0.0
        %574 = vmatpush1.msra.mxu0 0.0
        %575 = vmatprep.subr.mxu0 0.0
        %576 = vmatpush1.msra.mxu0 0.0
        %577 = vmatprep.subr.mxu0 0.0
        %578 = vmatpush1.msra.mxu0 0.0
        %579 = vmatprep.mubr.f32.mxu0 0.0
        %580 = vmatmul.mubr.f32.gmra.mrb[0].mxu0 %v513
        %v581 = vpop.f32.mrb[0].mxu0
        %v582 = vadd.f32 0.0, %v581
        %v583 = vpop.f32.mrb[0].mxu0
        %584 = vdwg.mxu0
        %586 = vrot.lane.b32.xlu0 %v423, 4
        %v587 = vpop.permute.xlu0 %586
        %590 = vrot.lane.b32.xlu0 %v582, 8
        %v591 = vpop.permute.xlu0 %590
        %593 = vrot.lane.b32.xlu0 %v423, 8
        %v594 = vpop.permute.xlu0 %593
        %vm596 = vcmask 31744
        %v597 = vsel %vm596, %v509, %v587
        %v598 = vsel %vm438, %v597, %v591
        %vm599 = vcmask 97280
        %v600 = vsel %vm599, %v598, %v594
        %v601 = vld [vmem:[%s1] sm:$0xff]
        %v602 = vld [vmem:[%s1 + $0x8] sm:$0xff]
        %vm603 = vcmask 130048
        %v605 = vsel %vm603, %v600, 0
        %607 = vmatprep.subr.mxu0 0.0
        %608 = vmatpush1.msra.mxu0 %v601
        %609 = vmatprep.subr.mxu0 0.0
        %610 = vmatpush1.msra.mxu0 %v602
        %611 = vmatprep.subr.mxu0 0.0
        %612 = vmatpush1.msra.mxu0 0.0
        %613 = vmatprep.subr.mxu0 0.0
        %614 = vmatpush1.msra.mxu0 0.0
        %615 = vmatprep.subr.mxu0 0.0
        %616 = vmatpush1.msra.mxu0 0.0
        %617 = vmatprep.subr.mxu0 0.0
        %618 = vmatpush1.msra.mxu0 0.0
        %619 = vmatprep.subr.mxu0 0.0
        %620 = vmatpush1.msra.mxu0 0.0
        %621 = vmatprep.subr.mxu0 0.0
        %622 = vmatpush1.msra.mxu0 0.0
        %623 = vmatprep.subr.mxu0 0.0
        %624 = vmatpush1.msra.mxu0 0.0
        %625 = vmatprep.subr.mxu0 0.0
        %626 = vmatpush1.msra.mxu0 0.0
        %627 = vmatprep.subr.mxu0 0.0
        %628 = vmatpush1.msra.mxu0 0.0
        %629 = vmatprep.subr.mxu0 0.0
        %630 = vmatpush1.msra.mxu0 0.0
        %631 = vmatprep.subr.mxu0 0.0
        %632 = vmatpush1.msra.mxu0 0.0
        %633 = vmatprep.subr.mxu0 0.0
        %634 = vmatpush1.msra.mxu0 0.0
        %635 = vmatprep.subr.mxu0 0.0
        %636 = vmatpush1.msra.mxu0 0.0
        %637 = vmatprep.subr.mxu0 0.0
        %638 = vmatpush1.msra.mxu0 0.0
        %639 = vmatprep.subr.mxu0 0.0
        %640 = vmatpush1.msra.mxu0 0.0
        %641 = vmatprep.subr.mxu0 0.0
        %642 = vmatpush1.msra.mxu0 0.0
        %643 = vmatprep.subr.mxu0 0.0
        %644 = vmatpush1.msra.mxu0 0.0
        %645 = vmatprep.subr.mxu0 0.0
        %646 = vmatpush1.msra.mxu0 0.0
        %647 = vmatprep.subr.mxu0 0.0
        %648 = vmatpush1.msra.mxu0 0.0
        %649 = vmatprep.subr.mxu0 0.0
        %650 = vmatpush1.msra.mxu0 0.0
        %651 = vmatprep.subr.mxu0 0.0
        %652 = vmatpush1.msra.mxu0 0.0
        %653 = vmatprep.subr.mxu0 0.0
        %654 = vmatpush1.msra.mxu0 0.0
        %655 = vmatprep.subr.mxu0 0.0
        %656 = vmatpush1.msra.mxu0 0.0
        %657 = vmatprep.subr.mxu0 0.0
        %658 = vmatpush1.msra.mxu0 0.0
        %659 = vmatprep.subr.mxu0 0.0
        %660 = vmatpush1.msra.mxu0 0.0
        %661 = vmatprep.subr.mxu0 0.0
        %662 = vmatpush1.msra.mxu0 0.0
        %663 = vmatprep.subr.mxu0 0.0
        %664 = vmatpush1.msra.mxu0 0.0
        %665 = vmatprep.subr.mxu0 0.0
        %666 = vmatpush1.msra.mxu0 0.0
        %667 = vmatprep.subr.mxu0 0.0
        %668 = vmatpush1.msra.mxu0 0.0
        %669 = vmatprep.subr.mxu0 0.0
        %670 = vmatpush1.msra.mxu0 0.0
        %671 = vmatprep.mubr.f32.mxu0 0.0
        %672 = vmatmul.mubr.f32.gmra.mrb[0].mxu0 %v605
        %v673 = vpop.f32.mrb[0].mxu0
        %v674 = vadd.f32 0.0, %v673
        %v675 = vpop.f32.mrb[0].mxu0
        %676 = vdwg.mxu0
        %v677 = vld [vmem:[%s9] sm:$0xff]
        %v678 = vld [vmem:[%s8] sm:$0xff]
        %v679 = vld [vmem:[%s8 + $0x8] sm:$0xff]
        %v680 = vld [vmem:[%s8 + $0x10] sm:$0xff]
        %v681 = vld [vmem:[%s8 + $0x18] sm:$0xff]
        %v682 = vld [vmem:[%s8 + $0x20] sm:$0xff]
        %v683 = vld [vmem:[%s8 + $0x28] sm:$0xff]
        %v684 = vld [vmem:[%s8 + $0x30] sm:$0xff]
        %v685 = vld [vmem:[%s8 + $0x38] sm:$0xff]
        %v686 = vld [vmem:[%s2] sm:$0xff]
        %v687 = vld [vmem:[%s2 + $0x8] sm:$0xff]
        %v688 = vld [vmem:[%s2 + $0x10] sm:$0xff]
        %v689 = vld [vmem:[%s2 + $0x18] sm:$0xff]
        %v690 = vld [vmem:[%s3] sm:$0x1]
        %v692 = vlaneseq
        %v693 = vshrl.u32 %v692, 7
        %v694 = vsub.s32 0, %v693
        %v695 = vrot.slane %v690, %v694
        %vm697 = vcmask 261120
        %v699 = vsel %vm697, %v674, 0
        %701 = vmatprep.subr.mxu0 0.0
        %702 = vmatpush1.msra.mxu0 %v686
        %703 = vmatprep.subr.mxu0 0.0
        %704 = vmatpush1.msra.mxu0 %v687
        %705 = vmatprep.subr.mxu0 0.0
        %706 = vmatpush1.msra.mxu0 %v688
        %707 = vmatprep.subr.mxu0 0.0
        %708 = vmatpush1.msra.mxu0 %v689
        %709 = vmatprep.subr.mxu0 0.0
        %710 = vmatpush1.msra.mxu0 0.0
        %711 = vmatprep.subr.mxu0 0.0
        %712 = vmatpush1.msra.mxu0 0.0
        %713 = vmatprep.subr.mxu0 0.0
        %714 = vmatpush1.msra.mxu0 0.0
        %715 = vmatprep.subr.mxu0 0.0
        %716 = vmatpush1.msra.mxu0 0.0
        %717 = vmatprep.subr.mxu0 0.0
        %718 = vmatpush1.msra.mxu0 0.0
        %719 = vmatprep.subr.mxu0 0.0
        %720 = vmatpush1.msra.mxu0 0.0
        %721 = vmatprep.subr.mxu0 0.0
        %722 = vmatpush1.msra.mxu0 0.0
        %723 = vmatprep.subr.mxu0 0.0
        %724 = vmatpush1.msra.mxu0 0.0
        %725 = vmatprep.subr.mxu0 0.0
        %726 = vmatpush1.msra.mxu0 0.0
        %727 = vmatprep.subr.mxu0 0.0
        %728 = vmatpush1.msra.mxu0 0.0
        %729 = vmatprep.subr.mxu0 0.0
        %730 = vmatpush1.msra.mxu0 0.0
        %731 = vmatprep.subr.mxu0 0.0
        %732 = vmatpush1.msra.mxu0 0.0
        %733 = vmatprep.subr.mxu0 0.0
        %734 = vmatpush1.msra.mxu0 0.0
        %735 = vmatprep.subr.mxu0 0.0
        %736 = vmatpush1.msra.mxu0 0.0
        %737 = vmatprep.subr.mxu0 0.0
        %738 = vmatpush1.msra.mxu0 0.0
        %739 = vmatprep.subr.mxu0 0.0
        %740 = vmatpush1.msra.mxu0 0.0
        %741 = vmatprep.subr.mxu0 0.0
        %742 = vmatpush1.msra.mxu0 0.0
        %743 = vmatprep.subr.mxu0 0.0
        %744 = vmatpush1.msra.mxu0 0.0
        %745 = vmatprep.subr.mxu0 0.0
        %746 = vmatpush1.msra.mxu0 0.0
        %747 = vmatprep.subr.mxu0 0.0
        %748 = vmatpush1.msra.mxu0 0.0
        %749 = vmatprep.subr.mxu0 0.0
        %750 = vmatpush1.msra.mxu0 0.0
        %751 = vmatprep.subr.mxu0 0.0
        %752 = vmatpush1.msra.mxu0 0.0
        %753 = vmatprep.subr.mxu0 0.0
        %754 = vmatpush1.msra.mxu0 0.0
        %755 = vmatprep.subr.mxu0 0.0
        %756 = vmatpush1.msra.mxu0 0.0
        %757 = vmatprep.subr.mxu0 0.0
        %758 = vmatpush1.msra.mxu0 0.0
        %759 = vmatprep.subr.mxu0 0.0
        %760 = vmatpush1.msra.mxu0 0.0
        %761 = vmatprep.subr.mxu0 0.0
        %762 = vmatpush1.msra.mxu0 0.0
        %763 = vmatprep.subr.mxu0 0.0
        %764 = vmatpush1.msra.mxu0 0.0
        %765 = vmatprep.mubr.f32.mxu0 0.0
        %766 = vmatmul.mubr.f32.gmra.mrb[0].mxu0 %v699
        %v767 = vpop.f32.mrb[0].mxu0
        %v768 = vadd.f32 %v695, %v767
        %v769 = vpop.f32.mrb[0].mxu0
        %770 = vdwg.mxu0
        %772 = vrot.lane.b32.xlu0 %v768, 96
        %v773 = vpop.permute.xlu0 %772
        %v774 = vsel %vm697, %v768, 0
        %v776 = vsel %vm697, %v773, 0
        %778 = vmatprep.subr.mxu0 0.0
        %779 = vmatpush1.xpose.msra.mxu0 %v776
        %780 = vmatprep.subr.mxu0 0.0
        %781 = vmatpush1.xpose.msra.mxu0 0.0
        %782 = vmatprep.subr.mxu0 0.0
        %783 = vmatpush1.xpose.msra.mxu0 0.0
        %784 = vmatprep.subr.mxu0 0.0
        %785 = vmatpush1.xpose.msra.mxu0 0.0
        %786 = vmatprep.subr.mxu0 0.0
        %787 = vmatpush1.xpose.msra.mxu0 0.0
        %788 = vmatprep.subr.mxu0 0.0
        %789 = vmatpush1.xpose.msra.mxu0 0.0
        %790 = vmatprep.subr.mxu0 0.0
        %791 = vmatpush1.xpose.msra.mxu0 0.0
        %792 = vmatprep.subr.mxu0 0.0
        %793 = vmatpush1.xpose.msra.mxu0 0.0
        %794 = vmatprep.subr.mxu0 0.0
        %795 = vmatpush1.xpose.msra.mxu0 0.0
        %796 = vmatprep.subr.mxu0 0.0
        %797 = vmatpush1.xpose.msra.mxu0 0.0
        %798 = vmatprep.subr.mxu0 0.0
        %799 = vmatpush1.xpose.msra.mxu0 0.0
        %800 = vmatprep.subr.mxu0 0.0
        %801 = vmatpush1.xpose.msra.mxu0 0.0
        %802 = vmatprep.subr.mxu0 0.0
        %803 = vmatpush1.xpose.msra.mxu0 0.0
        %804 = vmatprep.subr.mxu0 0.0
        %805 = vmatpush1.xpose.msra.mxu0 0.0
        %806 = vmatprep.subr.mxu0 0.0
        %807 = vmatpush1.xpose.msra.mxu0 0.0
        %808 = vmatprep.subr.mxu0 0.0
        %809 = vmatpush1.xpose.msra.mxu0 0.0
        %810 = vmatprep.subr.mxu0 0.0
        %811 = vmatpush1.xpose.msra.mxu0 0.0
        %812 = vmatprep.subr.mxu0 0.0
        %813 = vmatpush1.xpose.msra.mxu0 0.0
        %814 = vmatprep.subr.mxu0 0.0
        %815 = vmatpush1.xpose.msra.mxu0 0.0
        %816 = vmatprep.subr.mxu0 0.0
        %817 = vmatpush1.xpose.msra.mxu0 0.0
        %818 = vmatprep.subr.mxu0 0.0
        %819 = vmatpush1.xpose.msra.mxu0 0.0
        %820 = vmatprep.subr.mxu0 0.0
        %821 = vmatpush1.xpose.msra.mxu0 0.0
        %822 = vmatprep.subr.mxu0 0.0
        %823 = vmatpush1.xpose.msra.mxu0 0.0
        %824 = vmatprep.subr.mxu0 0.0
        %825 = vmatpush1.xpose.msra.mxu0 0.0
        %826 = vmatprep.subr.mxu0 0.0
        %827 = vmatpush1.xpose.msra.mxu0 0.0
        %828 = vmatprep.subr.mxu0 0.0
        %829 = vmatpush1.xpose.msra.mxu0 0.0
        %830 = vmatprep.subr.mxu0 0.0
        %831 = vmatpush1.xpose.msra.mxu0 0.0
        %832 = vmatprep.subr.mxu0 0.0
        %833 = vmatpush1.xpose.msra.mxu0 0.0
        %834 = vmatprep.subr.mxu0 0.0
        %835 = vmatpush1.xpose.msra.mxu0 0.0
        %836 = vmatprep.subr.mxu0 0.0
        %837 = vmatpush1.xpose.msra.mxu0 0.0
        %838 = vmatprep.subr.mxu0 0.0
        %839 = vmatpush1.xpose.msra.mxu0 0.0
        %840 = vmatprep.subr.mxu0 0.0
        %841 = vmatpush1.xpose.msra.mxu0 0.0
        %842 = vmatprep.mubr.f32.mxu0 0.0
        %843 = vmatmul.mubr.f32.gmra.mrb[0].mxu0 %v774
        %v844 = vpop.f32.mrb[0].mxu0
        %v845 = vadd.f32 0.0, %v844
        %v846 = vpop.f32.mrb[0].mxu0
        %847 = vdwg.mxu0
        %v849 = vrot.slane %v845, 1
        %850 = vrot.lane.b32.xlu0 %v849, 8
        %v851 = vpop.permute.xlu0 %850
        %v853 = vrot.slane %v845, 2
        %854 = vrot.lane.b32.xlu0 %v853, 16
        %v855 = vpop.permute.xlu0 %854
        %v857 = vrot.slane %v845, 3
        %858 = vrot.lane.b32.xlu0 %v857, 24
        %v859 = vpop.permute.xlu0 %858
        %v861 = vrot.slane %v845, 4
        %862 = vrot.lane.b32.xlu0 %v861, 32
        %v863 = vpop.permute.xlu0 %862
        %v865 = vrot.slane %v845, 5
        %866 = vrot.lane.b32.xlu0 %v865, 40
        %v867 = vpop.permute.xlu0 %866
        %v869 = vrot.slane %v845, 6
        %870 = vrot.lane.b32.xlu0 %v869, 48
        %v871 = vpop.permute.xlu0 %870
        %v873 = vrot.slane %v845, 7
        %874 = vrot.lane.b32.xlu0 %v873, 56
        %v875 = vpop.permute.xlu0 %874
        %v877 = vsel %vm438, %v845, %v851
        %v878 = vsel %vm603, %v877, %v855
        %vm879 = vcmask 195584
        %v880 = vsel %vm879, %v878, %v859
        %v881 = vsel %vm697, %v880, %v863
        %vm882 = vcmask 326656
        %v883 = vsel %vm882, %v881, %v867
        %vm884 = vcmask 392192
        %v885 = vsel %vm884, %v883, %v871
        %vm886 = vcmask 457728
        %v887 = vsel %vm886, %v885, %v875
        %vm888 = vcmask 523264
        %v890 = vsel %vm888, %v887, 0
        %892 = vmatprep.subr.mxu0 0.0
        %893 = vmatpush1.msra.mxu0 %v678
        %894 = vmatprep.subr.mxu0 0.0
        %895 = vmatpush1.msra.mxu0 %v679
        %896 = vmatprep.subr.mxu0 0.0
        %897 = vmatpush1.msra.mxu0 %v680
        %898 = vmatprep.subr.mxu0 0.0
        %899 = vmatpush1.msra.mxu0 %v681
        %900 = vmatprep.subr.mxu0 0.0
        %901 = vmatpush1.msra.mxu0 %v682
        %902 = vmatprep.subr.mxu0 0.0
        %903 = vmatpush1.msra.mxu0 %v683
        %904 = vmatprep.subr.mxu0 0.0
        %905 = vmatpush1.msra.mxu0 %v684
        %906 = vmatprep.subr.mxu0 0.0
        %907 = vmatpush1.msra.mxu0 %v685
        %908 = vmatprep.subr.mxu0 0.0
        %909 = vmatpush1.msra.mxu0 0.0
        %910 = vmatprep.subr.mxu0 0.0
        %911 = vmatpush1.msra.mxu0 0.0
        %912 = vmatprep.subr.mxu0 0.0
        %913 = vmatpush1.msra.mxu0 0.0
        %914 = vmatprep.subr.mxu0 0.0
        %915 = vmatpush1.msra.mxu0 0.0
        %916 = vmatprep.subr.mxu0 0.0
        %917 = vmatpush1.msra.mxu0 0.0
        %918 = vmatprep.subr.mxu0 0.0
        %919 = vmatpush1.msra.mxu0 0.0
        %920 = vmatprep.subr.mxu0 0.0
        %921 = vmatpush1.msra.mxu0 0.0
        %922 = vmatprep.subr.mxu0 0.0
        %923 = vmatpush1.msra.mxu0 0.0
        %924 = vmatprep.subr.mxu0 0.0
        %925 = vmatpush1.msra.mxu0 0.0
        %926 = vmatprep.subr.mxu0 0.0
        %927 = vmatpush1.msra.mxu0 0.0
        %928 = vmatprep.subr.mxu0 0.0
        %929 = vmatpush1.msra.mxu0 0.0
        %930 = vmatprep.subr.mxu0 0.0
        %931 = vmatpush1.msra.mxu0 0.0
        %932 = vmatprep.subr.mxu0 0.0
        %933 = vmatpush1.msra.mxu0 0.0
        %934 = vmatprep.subr.mxu0 0.0
        %935 = vmatpush1.msra.mxu0 0.0
        %936 = vmatprep.subr.mxu0 0.0
        %937 = vmatpush1.msra.mxu0 0.0
        %938 = vmatprep.subr.mxu0 0.0
        %939 = vmatpush1.msra.mxu0 0.0
        %940 = vmatprep.subr.mxu0 0.0
        %941 = vmatpush1.msra.mxu0 0.0
        %942 = vmatprep.subr.mxu0 0.0
        %943 = vmatpush1.msra.mxu0 0.0
        %944 = vmatprep.subr.mxu0 0.0
        %945 = vmatpush1.msra.mxu0 0.0
        %946 = vmatprep.subr.mxu0 0.0
        %947 = vmatpush1.msra.mxu0 0.0
        %948 = vmatprep.subr.mxu0 0.0
        %949 = vmatpush1.msra.mxu0 0.0
        %950 = vmatprep.subr.mxu0 0.0
        %951 = vmatpush1.msra.mxu0 0.0
        %952 = vmatprep.subr.mxu0 0.0
        %953 = vmatpush1.msra.mxu0 0.0
        %954 = vmatprep.subr.mxu0 0.0
        %955 = vmatpush1.msra.mxu0 0.0
        %956 = vmatprep.mubr.f32.mxu0 0.0
        %957 = vmatmul.mubr.f32.gmra.mrb[0].mxu0 %v890
        %v958 = vpop.f32.mrb[0].mxu0
        %v959 = vadd.f32 0.0, %v958
        %v960 = vpop.f32.mrb[0].mxu0
        %961 = vdwg.mxu0
        %v962 = vmul.f32 %v959, 0.03125
        %vm963 = vcmask 57344
        %v964 = vsel %vm963, %v962, -inf
        %965 = vmax.xlane.f32.xlu0 %v964
        %v966 = vpop.xlane.xlu0 %965
        %v967 = vrot.slane %v966, 4
        %v968 = vmax.f32 %v966, %v967
        %v969 = vrot.slane %v968, 2
        %v970 = vmax.f32 %v968, %v969
        %v971 = vrot.slane %v970, 1
        %v972 = vmax.f32 %v970, %v971
        %s973 = vtos %v972
        %v974 = vstv %s973
        %vm975 = vcmp.eq.f32.partialorder %v962, %v974
        %v976 = vcvt.s32.f32 %v427
        %v977 = vsel %vm975, %v976, 8.0
        %v978 = vsel %vm963, %v977, inf
        %979 = vmin.xlane.f32.xlu0 %v978
        %v980 = vpop.xlane.xlu0 %979
        %v981 = vrot.slane %v980, 4
        %v982 = vmin.f32 %v980, %v981
        %v983 = vrot.slane %v982, 2
        %v984 = vmin.f32 %v982, %v983
        %v985 = vrot.slane %v984, 1
        %v986 = vmin.f32 %v984, %v985
        %s987 = vtos %v986
        %s988 = scvt.f32.s32.to.zero.pseudo %s987
        %v989 = vstv %s988
        %vm990 = vcmp.eq.s32.totalorder %v427, %v989
        %v991 = vsel %vm990, -inf, %v962
        %v992 = vsel %vm963, %v991, -inf
        %993 = vmax.xlane.f32.xlu0 %v992
        %v994 = vpop.xlane.xlu0 %993
        %v995 = vrot.slane %v994, 4
        %v996 = vmax.f32 %v994, %v995
        %v997 = vrot.slane %v996, 2
        %v998 = vmax.f32 %v996, %v997
        %v999 = vrot.slane %v998, 1
        %v1000 = vmax.f32 %v998, %v999
        %s1001 = vtos %v1000
        %v1002 = vstv %s1001
        %vm1003 = vcmp.eq.f32.partialorder %v991, %v1002
        %v1004 = vsel %vm1003, %v976, 8.0
        %v1005 = vsel %vm963, %v1004, inf
        %1006 = vmin.xlane.f32.xlu0 %v1005
        %v1007 = vpop.xlane.xlu0 %1006
        %v1008 = vrot.slane %v1007, 4
        %v1009 = vmin.f32 %v1007, %v1008
        %v1010 = vrot.slane %v1009, 2
        %v1011 = vmin.f32 %v1009, %v1010
        %v1012 = vrot.slane %v1011, 1
        %v1013 = vmin.f32 %v1011, %v1012
        %s1014 = vtos %v1013
        %s1015 = scvt.f32.s32.to.zero.pseudo %s1014
        %s1016 = ssub.f32 %s973, %s973
        %v1017 = vstv %s1016
        %v1018 = vmul.f32 %v1017, 1.442695
        %v1019 = vpow.pop %v1018
        %s1020 = vtos %v1019
        %s1021 = ssub.f32 %s1001, %s973
        %v1022 = vstv %s1021
        %v1023 = vmul.f32 %v1022, 1.442695
        %v1024 = vpow.pop %v1023
        %s1025 = vtos %v1024
        %s1026 = sadd.f32 %s1020, 0.0
        %s1027 = sadd.f32 %s1026, %s1025
        %v1028 = vstv %s1027
        %v1029 = vrcp.pop %v1028
        %s1030 = vtos %v1029
        %v1031 = vadd.s32 %v425, %v989
        %v1032 = vand.u32 %v1031, 7
        %vm1033 = vcmp.eq.s32.totalorder %v427, %v1032
        %v1034 = vsel %vm1033, 1, 0
        %v1035 = vcvt.s32.f32 %v1034
        %s1036 = smul.f32 %s1020, %s1030
        %v1037 = vstv %s1036
        %v1038 = vmul.f32 %v1037, %v1035
        %v1039 = vadd.f32 %v1038, 0.0
        %v1040 = vstv %s1015
        %v1041 = vadd.s32 %v425, %v1040
        %v1042 = vand.u32 %v1041, 7
        %vm1043 = vcmp.eq.s32.totalorder %v427, %v1042
        %v1044 = vsel %vm1043, 1, 0
        %v1045 = vcvt.s32.f32 %v1044
        %s1046 = smul.f32 %s1025, %s1030
        %v1047 = vstv %s1046
        %v1048 = vmul.f32 %v1047, %v1045
        %v1049 = vadd.f32 %v1039, %v1048
        %1050 = vrot.lane.b32.xlu0 %v768, 64
        %v1051 = vpop.permute.xlu0 %1050
        %v1054 = vsel %vm438, %v1049, 0
        %1056 = vmatprep.subr.mxu0 0.0
        %1057 = vmatpush1.msra.mxu0 %v1051
        %1058 = vmatprep.subr.mxu0 0.0
        %1059 = vmatpush1.msra.mxu0 0.0
        %1060 = vmatprep.subr.mxu0 0.0
        %1061 = vmatpush1.msra.mxu0 0.0
        %1062 = vmatprep.subr.mxu0 0.0
        %1063 = vmatpush1.msra.mxu0 0.0
        %1064 = vmatprep.subr.mxu0 0.0
        %1065 = vmatpush1.msra.mxu0 0.0
        %1066 = vmatprep.subr.mxu0 0.0
        %1067 = vmatpush1.msra.mxu0 0.0
        %1068 = vmatprep.subr.mxu0 0.0
        %1069 = vmatpush1.msra.mxu0 0.0
        %1070 = vmatprep.subr.mxu0 0.0
        %1071 = vmatpush1.msra.mxu0 0.0
        %1072 = vmatprep.subr.mxu0 0.0
        %1073 = vmatpush1.msra.mxu0 0.0
        %1074 = vmatprep.subr.mxu0 0.0
        %1075 = vmatpush1.msra.mxu0 0.0
        %1076 = vmatprep.subr.mxu0 0.0
        %1077 = vmatpush1.msra.mxu0 0.0
        %1078 = vmatprep.subr.mxu0 0.0
        %1079 = vmatpush1.msra.mxu0 0.0
        %1080 = vmatprep.subr.mxu0 0.0
        %1081 = vmatpush1.msra.mxu0 0.0
        %1082 = vmatprep.subr.mxu0 0.0
        %1083 = vmatpush1.msra.mxu0 0.0
        %1084 = vmatprep.subr.mxu0 0.0
        %1085 = vmatpush1.msra.mxu0 0.0
        %1086 = vmatprep.subr.mxu0 0.0
        %1087 = vmatpush1.msra.mxu0 0.0
        %1088 = vmatprep.subr.mxu0 0.0
        %1089 = vmatpush1.msra.mxu0 0.0
        %1090 = vmatprep.subr.mxu0 0.0
        %1091 = vmatpush1.msra.mxu0 0.0
        %1092 = vmatprep.subr.mxu0 0.0
        %1093 = vmatpush1.msra.mxu0 0.0
        %1094 = vmatprep.subr.mxu0 0.0
        %1095 = vmatpush1.msra.mxu0 0.0
        %1096 = vmatprep.subr.mxu0 0.0
        %1097 = vmatpush1.msra.mxu0 0.0
        %1098 = vmatprep.subr.mxu0 0.0
        %1099 = vmatpush1.msra.mxu0 0.0
        %1100 = vmatprep.subr.mxu0 0.0
        %1101 = vmatpush1.msra.mxu0 0.0
        %1102 = vmatprep.subr.mxu0 0.0
        %1103 = vmatpush1.msra.mxu0 0.0
        %1104 = vmatprep.subr.mxu0 0.0
        %1105 = vmatpush1.msra.mxu0 0.0
        %1106 = vmatprep.subr.mxu0 0.0
        %1107 = vmatpush1.msra.mxu0 0.0
        %1108 = vmatprep.subr.mxu0 0.0
        %1109 = vmatpush1.msra.mxu0 0.0
        %1110 = vmatprep.subr.mxu0 0.0
        %1111 = vmatpush1.msra.mxu0 0.0
        %1112 = vmatprep.subr.mxu0 0.0
        %1113 = vmatpush1.msra.mxu0 0.0
        %1114 = vmatprep.subr.mxu0 0.0
        %1115 = vmatpush1.msra.mxu0 0.0
        %1116 = vmatprep.subr.mxu0 0.0
        %1117 = vmatpush1.msra.mxu0 0.0
        %1118 = vmatprep.subr.mxu0 0.0
        %1119 = vmatpush1.msra.mxu0 0.0
        %1120 = vmatprep.mubr.f32.mxu0 0.0
        %1121 = vmatmul.mubr.f32.gmra.mrb[0].mxu0 %v1054
        %v1122 = vpop.f32.mrb[0].mxu0
        %v1123 = vadd.f32 0.0, %v1122
        %v1124 = vpop.f32.mrb[0].mxu0
        %1125 = vdwg.mxu0
        %v1126 = vld [vmem:[%s4] sm:$0xff]
        %v1127 = vld [vmem:[%s4 + $0x8] sm:$0xff]
        %v1128 = vld [vmem:[%s4 + $0x10] sm:$0xff]
        %v1129 = vld [vmem:[%s4 + $0x18] sm:$0xff]
        %v1130 = vld [vmem:[#allocation2] sm:$0x1]
        %v1132 = vlaneseq
        %v1133 = vshrl.u32 %v1132, 7
        %v1134 = vsub.s32 0, %v1133
        %v1135 = vrot.slane %v1130, %v1134
        %v1138 = vsel %vm697, %v1123, 0
        %1140 = vmatprep.subr.mxu0 0.0
        %1141 = vmatpush1.msra.mxu0 %v1126
        %1142 = vmatprep.subr.mxu0 0.0
        %1143 = vmatpush1.msra.mxu0 %v1127
        %1144 = vmatprep.subr.mxu0 0.0
        %1145 = vmatpush1.msra.mxu0 %v1128
        %1146 = vmatprep.subr.mxu0 0.0
        %1147 = vmatpush1.msra.mxu0 %v1129
        %1148 = vmatprep.subr.mxu0 0.0
        %1149 = vmatpush1.msra.mxu0 0.0
        %1150 = vmatprep.subr.mxu0 0.0
        %1151 = vmatpush1.msra.mxu0 0.0
        %1152 = vmatprep.subr.mxu0 0.0
        %1153 = vmatpush1.msra.mxu0 0.0
        %1154 = vmatprep.subr.mxu0 0.0
        %1155 = vmatpush1.msra.mxu0 0.0
        %1156 = vmatprep.subr.mxu0 0.0
        %1157 = vmatpush1.msra.mxu0 0.0
        %1158 = vmatprep.subr.mxu0 0.0
        %1159 = vmatpush1.msra.mxu0 0.0
        %1160 = vmatprep.subr.mxu0 0.0
        %1161 = vmatpush1.msra.mxu0 0.0
        %1162 = vmatprep.subr.mxu0 0.0
        %1163 = vmatpush1.msra.mxu0 0.0
        %1164 = vmatprep.subr.mxu0 0.0
        %1165 = vmatpush1.msra.mxu0 0.0
        %1166 = vmatprep.subr.mxu0 0.0
        %1167 = vmatpush1.msra.mxu0 0.0
        %1168 = vmatprep.subr.mxu0 0.0
        %1169 = vmatpush1.msra.mxu0 0.0
        %1170 = vmatprep.subr.mxu0 0.0
        %1171 = vmatpush1.msra.mxu0 0.0
        %1172 = vmatprep.subr.mxu0 0.0
        %1173 = vmatpush1.msra.mxu0 0.0
        %1174 = vmatprep.subr.mxu0 0.0
        %1175 = vmatpush1.msra.mxu0 0.0
        %1176 = vmatprep.subr.mxu0 0.0
        %1177 = vmatpush1.msra.mxu0 0.0
        %1178 = vmatprep.subr.mxu0 0.0
        %1179 = vmatpush1.msra.mxu0 0.0
        %1180 = vmatprep.subr.mxu0 0.0
        %1181 = vmatpush1.msra.mxu0 0.0
        %1182 = vmatprep.subr.mxu0 0.0
        %1183 = vmatpush1.msra.mxu0 0.0
        %1184 = vmatprep.subr.mxu0 0.0
        %1185 = vmatpush1.msra.mxu0 0.0
        %1186 = vmatprep.subr.mxu0 0.0
        %1187 = vmatpush1.msra.mxu0 0.0
        %1188 = vmatprep.subr.mxu0 0.0
        %1189 = vmatpush1.msra.mxu0 0.0
        %1190 = vmatprep.subr.mxu0 0.0
        %1191 = vmatpush1.msra.mxu0 0.0
        %1192 = vmatprep.subr.mxu0 0.0
        %1193 = vmatpush1.msra.mxu0 0.0
        %1194 = vmatprep.subr.mxu0 0.0
        %1195 = vmatpush1.msra.mxu0 0.0
        %1196 = vmatprep.subr.mxu0 0.0
        %1197 = vmatpush1.msra.mxu0 0.0
        %1198 = vmatprep.subr.mxu0 0.0
        %1199 = vmatpush1.msra.mxu0 0.0
        %1200 = vmatprep.subr.mxu0 0.0
        %1201 = vmatpush1.msra.mxu0 0.0
        %1202 = vmatprep.subr.mxu0 0.0
        %1203 = vmatpush1.msra.mxu0 0.0
        %1204 = vmatprep.mubr.f32.mxu0 0.0
        %1205 = vmatmul.mubr.f32.gmra.mrb[0].mxu0 %v1138
        %v1206 = vpop.f32.mrb[0].mxu0
        %v1207 = vadd.f32 %v1135, %v1206
        %v1208 = vpop.f32.mrb[0].mxu0
        %1209 = vdwg.mxu0
        %v1210 = vadd.f32 %v674, %v1207
        %v1212 = vsel %vm438, %v677, 0
        %1214 = vmatprep.subr.mxu0 0.0
        %1215 = vmatpush1.msra.mxu0 %v1210
        %1216 = vmatprep.subr.mxu0 0.0
        %1217 = vmatpush1.msra.mxu0 0.0
        %1218 = vmatprep.subr.mxu0 0.0
        %1219 = vmatpush1.msra.mxu0 0.0
        %1220 = vmatprep.subr.mxu0 0.0
        %1221 = vmatpush1.msra.mxu0 0.0
        %1222 = vmatprep.subr.mxu0 0.0
        %1223 = vmatpush1.msra.mxu0 0.0
        %1224 = vmatprep.subr.mxu0 0.0
        %1225 = vmatpush1.msra.mxu0 0.0
        %1226 = vmatprep.subr.mxu0 0.0
        %1227 = vmatpush1.msra.mxu0 0.0
        %1228 = vmatprep.subr.mxu0 0.0
        %1229 = vmatpush1.msra.mxu0 0.0
        %1230 = vmatprep.subr.mxu0 0.0
        %1231 = vmatpush1.msra.mxu0 0.0
        %1232 = vmatprep.subr.mxu0 0.0
        %1233 = vmatpush1.msra.mxu0 0.0
        %1234 = vmatprep.subr.mxu0 0.0
        %1235 = vmatpush1.msra.mxu0 0.0
        %1236 = vmatprep.subr.mxu0 0.0
        %1237 = vmatpush1.msra.mxu0 0.0
        %1238 = vmatprep.subr.mxu0 0.0
        %1239 = vmatpush1.msra.mxu0 0.0
        %1240 = vmatprep.subr.mxu0 0.0
        %1241 = vmatpush1.msra.mxu0 0.0
        %1242 = vmatprep.subr.mxu0 0.0
        %1243 = vmatpush1.msra.mxu0 0.0
        %1244 = vmatprep.subr.mxu0 0.0
        %1245 = vmatpush1.msra.mxu0 0.0
        %1246 = vmatprep.subr.mxu0 0.0
        %1247 = vmatpush1.msra.mxu0 0.0
        %1248 = vmatprep.subr.mxu0 0.0
        %1249 = vmatpush1.msra.mxu0 0.0
        %1250 = vmatprep.subr.mxu0 0.0
        %1251 = vmatpush1.msra.mxu0 0.0
        %1252 = vmatprep.subr.mxu0 0.0
        %1253 = vmatpush1.msra.mxu0 0.0
        %1254 = vmatprep.subr.mxu0 0.0
        %1255 = vmatpush1.msra.mxu0 0.0
        %1256 = vmatprep.subr.mxu0 0.0
        %1257 = vmatpush1.msra.mxu0 0.0
        %1258 = vmatprep.subr.mxu0 0.0
        %1259 = vmatpush1.msra.mxu0 0.0
        %1260 = vmatprep.subr.mxu0 0.0
        %1261 = vmatpush1.msra.mxu0 0.0
        %1262 = vmatprep.subr.mxu0 0.0
        %1263 = vmatpush1.msra.mxu0 0.0
        %1264 = vmatprep.subr.mxu0 0.0
        %1265 = vmatpush1.msra.mxu0 0.0
        %1266 = vmatprep.subr.mxu0 0.0
        %1267 = vmatpush1.msra.mxu0 0.0
        %1268 = vmatprep.subr.mxu0 0.0
        %1269 = vmatpush1.msra.mxu0 0.0
        %1270 = vmatprep.subr.mxu0 0.0
        %1271 = vmatpush1.msra.mxu0 0.0
        %1272 = vmatprep.subr.mxu0 0.0
        %1273 = vmatpush1.msra.mxu0 0.0
        %1274 = vmatprep.subr.mxu0 0.0
        %1275 = vmatpush1.msra.mxu0 0.0
        %1276 = vmatprep.subr.mxu0 0.0
        %1277 = vmatpush1.msra.mxu0 0.0
        %1278 = vmatprep.mubr.f32.mxu0 0.0
        %1279 = vmatmul.mubr.f32.gmra.mrb[0].mxu0 %v1212
        %v1280 = vpop.f32.mrb[0].mxu0
        %v1281 = vadd.f32 0.0, %v1280
        %v1282 = vpop.f32.mrb[0].mxu0
        %1283 = vdwg.mxu0
        %v1284 = vsub.f32 %v1210, %v1281
        %v1285 = vld [vmem:[%s6] sm:$0xff]
        %v1286 = vld [vmem:[%s6 + $0x8] sm:$0xff]
        %v1287 = vld [vmem:[%s6 + $0x10] sm:$0xff]
        %v1288 = vld [vmem:[%s6 + $0x18] sm:$0xff]
        %v1290 = vsel %vm697, %v1284, 0
        %1292 = vmatprep.subr.mxu0 0.0
        %1293 = vmatpush1.msra.mxu0 %v1285
        %1294 = vmatprep.subr.mxu0 0.0
        %1295 = vmatpush1.msra.mxu0 %v1286
        %1296 = vmatprep.subr.mxu0 0.0
        %1297 = vmatpush1.msra.mxu0 %v1287
        %1298 = vmatprep.subr.mxu0 0.0
        %1299 = vmatpush1.msra.mxu0 %v1288
        %1300 = vmatprep.subr.mxu0 0.0
        %1301 = vmatpush1.msra.mxu0 0.0
        %1302 = vmatprep.subr.mxu0 0.0
        %1303 = vmatpush1.msra.mxu0 0.0
        %1304 = vmatprep.subr.mxu0 0.0
        %1305 = vmatpush1.msra.mxu0 0.0
        %1306 = vmatprep.subr.mxu0 0.0
        %1307 = vmatpush1.msra.mxu0 0.0
        %1308 = vmatprep.subr.mxu0 0.0
        %1309 = vmatpush1.msra.mxu0 0.0
        %1310 = vmatprep.subr.mxu0 0.0
        %1311 = vmatpush1.msra.mxu0 0.0
        %1312 = vmatprep.subr.mxu0 0.0
        %1313 = vmatpush1.msra.mxu0 0.0
        %1314 = vmatprep.subr.mxu0 0.0
        %1315 = vmatpush1.msra.mxu0 0.0
        %1316 = vmatprep.subr.mxu0 0.0
        %1317 = vmatpush1.msra.mxu0 0.0
        %1318 = vmatprep.subr.mxu0 0.0
        %1319 = vmatpush1.msra.mxu0 0.0
        %1320 = vmatprep.subr.mxu0 0.0
        %1321 = vmatpush1.msra.mxu0 0.0
        %1322 = vmatprep.subr.mxu0 0.0
        %1323 = vmatpush1.msra.mxu0 0.0
        %1324 = vmatprep.subr.mxu0 0.0
        %1325 = vmatpush1.msra.mxu0 0.0
        %1326 = vmatprep.subr.mxu0 0.0
        %1327 = vmatpush1.msra.mxu0 0.0
        %1328 = vmatprep.subr.mxu0 0.0
        %1329 = vmatpush1.msra.mxu0 0.0
        %1330 = vmatprep.subr.mxu0 0.0
        %1331 = vmatpush1.msra.mxu0 0.0
        %1332 = vmatprep.subr.mxu0 0.0
        %1333 = vmatpush1.msra.mxu0 0.0
        %1334 = vmatprep.subr.mxu0 0.0
        %1335 = vmatpush1.msra.mxu0 0.0
        %1336 = vmatprep.subr.mxu0 0.0
        %1337 = vmatpush1.msra.mxu0 0.0
        %1338 = vmatprep.subr.mxu0 0.0
        %1339 = vmatpush1.msra.mxu0 0.0
        %1340 = vmatprep.subr.mxu0 0.0
        %1341 = vmatpush1.msra.mxu0 0.0
        %1342 = vmatprep.subr.mxu0 0.0
        %1343 = vmatpush1.msra.mxu0 0.0
        %1344 = vmatprep.subr.mxu0 0.0
        %1345 = vmatpush1.msra.mxu0 0.0
        %1346 = vmatprep.subr.mxu0 0.0
        %1347 = vmatpush1.msra.mxu0 0.0
        %1348 = vmatprep.subr.mxu0 0.0
        %1349 = vmatpush1.msra.mxu0 0.0
        %1350 = vmatprep.subr.mxu0 0.0
        %1351 = vmatpush1.msra.mxu0 0.0
        %1352 = vmatprep.subr.mxu0 0.0
        %1353 = vmatpush1.msra.mxu0 0.0
        %1354 = vmatprep.subr.mxu0 0.0
        %1355 = vmatpush1.msra.mxu0 0.0
        %1356 = vmatprep.mubr.f32.mxu0 0.0
        %1357 = vmatmul.mubr.f32.gmra.mrb[0].mxu0 %v1290
        %v1358 = vpop.f32.mrb[0].mxu0
        %v1359 = vadd.f32 0.0, %v1358
        %v1360 = vpop.f32.mrb[0].mxu0
        %1361 = vdwg.mxu0
        %v1362 = vmax.f32 %v1359, 0.0
        %v1363 = vld [vmem:[%s7] sm:$0xff]
        %v1364 = vld [vmem:[%s7 + $0x8] sm:$0xff]
        %v1365 = vld [vmem:[%s7 + $0x10] sm:$0xff]
        %v1366 = vld [vmem:[%s7 + $0x18] sm:$0xff]
        %v1367 = vld [vmem:[%s7 + $0x20] sm:$0xff]
        %v1368 = vld [vmem:[%s7 + $0x28] sm:$0xff]
        %v1369 = vld [vmem:[%s7 + $0x30] sm:$0xff]
        %v1370 = vld [vmem:[%s7 + $0x38] sm:$0xff]
        %v1372 = vsel %vm888, %v1362, 0
        %1374 = vmatprep.subr.mxu0 0.0
        %1375 = vmatpush1.msra.mxu0 %v1363
        %1376 = vmatprep.subr.mxu0 0.0
        %1377 = vmatpush1.msra.mxu0 %v1364
        %1378 = vmatprep.subr.mxu0 0.0
        %1379 = vmatpush1.msra.mxu0 %v1365
        %1380 = vmatprep.subr.mxu0 0.0
        %1381 = vmatpush1.msra.mxu0 %v1366
        %1382 = vmatprep.subr.mxu0 0.0
        %1383 = vmatpush1.msra.mxu0 %v1367
        %1384 = vmatprep.subr.mxu0 0.0
        %1385 = vmatpush1.msra.mxu0 %v1368
        %1386 = vmatprep.subr.mxu0 0.0
        %1387 = vmatpush1.msra.mxu0 %v1369
        %1388 = vmatprep.subr.mxu0 0.0
        %1389 = vmatpush1.msra.mxu0 %v1370
        %1390 = vmatprep.subr.mxu0 0.0
        %1391 = vmatpush1.msra.mxu0 0.0
        %1392 = vmatprep.subr.mxu0 0.0
        %1393 = vmatpush1.msra.mxu0 0.0
        %1394 = vmatprep.subr.mxu0 0.0
        %1395 = vmatpush1.msra.mxu0 0.0
        %1396 = vmatprep.subr.mxu0 0.0
        %1397 = vmatpush1.msra.mxu0 0.0
        %1398 = vmatprep.subr.mxu0 0.0
        %1399 = vmatpush1.msra.mxu0 0.0
        %1400 = vmatprep.subr.mxu0 0.0
        %1401 = vmatpush1.msra.mxu0 0.0
        %1402 = vmatprep.subr.mxu0 0.0
        %1403 = vmatpush1.msra.mxu0 0.0
        %1404 = vmatprep.subr.mxu0 0.0
        %1405 = vmatpush1.msra.mxu0 0.0
        %1406 = vmatprep.subr.mxu0 0.0
        %1407 = vmatpush1.msra.mxu0 0.0
        %1408 = vmatprep.subr.mxu0 0.0
        %1409 = vmatpush1.msra.mxu0 0.0
        %1410 = vmatprep.subr.mxu0 0.0
        %1411 = vmatpush1.msra.mxu0 0.0
        %1412 = vmatprep.subr.mxu0 0.0
        %1413 = vmatpush1.msra.mxu0 0.0
        %1414 = vmatprep.subr.mxu0 0.0
        %1415 = vmatpush1.msra.mxu0 0.0
        %1416 = vmatprep.subr.mxu0 0.0
        %1417 = vmatpush1.msra.mxu0 0.0
        %1418 = vmatprep.subr.mxu0 0.0
        %1419 = vmatpush1.msra.mxu0 0.0
        %1420 = vmatprep.subr.mxu0 0.0
        %1421 = vmatpush1.msra.mxu0 0.0
        %1422 = vmatprep.subr.mxu0 0.0
        %1423 = vmatpush1.msra.mxu0 0.0
        %1424 = vmatprep.subr.mxu0 0.0
        %1425 = vmatpush1.msra.mxu0 0.0
        %1426 = vmatprep.subr.mxu0 0.0
        %1427 = vmatpush1.msra.mxu0 0.0
        %1428 = vmatprep.subr.mxu0 0.0
        %1429 = vmatpush1.msra.mxu0 0.0
        %1430 = vmatprep.subr.mxu0 0.0
        %1431 = vmatpush1.msra.mxu0 0.0
        %1432 = vmatprep.subr.mxu0 0.0
        %1433 = vmatpush1.msra.mxu0 0.0
        %1434 = vmatprep.subr.mxu0 0.0
        %1435 = vmatpush1.msra.mxu0 0.0
        %1436 = vmatprep.subr.mxu0 0.0
        %1437 = vmatpush1.msra.mxu0 0.0
        %1438 = vmatprep.mubr.f32.mxu0 0.0
        %1439 = vmatmul.mubr.f32.gmra.mrb[0].mxu0 %v1372
        %v1440 = vpop.f32.mrb[0].mxu0
        %v1441 = vadd.f32 0.0, %v1440
        %v1442 = vpop.f32.mrb[0].mxu0
        %1443 = vdwg.mxu0
        %v1444 = vadd.f32 %v1284, %v1441
        %1445 = vmatprep.subr.mxu0 0.0
        %1446 = vmatpush1.msra.mxu0 %v1444
        %1447 = vmatprep.subr.mxu0 0.0
        %1448 = vmatpush1.msra.mxu0 0.0
        %1449 = vmatprep.subr.mxu0 0.0
        %1450 = vmatpush1.msra.mxu0 0.0
        %1451 = vmatprep.subr.mxu0 0.0
        %1452 = vmatpush1.msra.mxu0 0.0
        %1453 = vmatprep.subr.mxu0 0.0
        %1454 = vmatpush1.msra.mxu0 0.0
        %1455 = vmatprep.subr.mxu0 0.0
        %1456 = vmatpush1.msra.mxu0 0.0
        %1457 = vmatprep.subr.mxu0 0.0
        %1458 = vmatpush1.msra.mxu0 0.0
        %1459 = vmatprep.subr.mxu0 0.0
        %1460 = vmatpush1.msra.mxu0 0.0
        %1461 = vmatprep.subr.mxu0 0.0
        %1462 = vmatpush1.msra.mxu0 0.0
        %1463 = vmatprep.subr.mxu0 0.0
        %1464 = vmatpush1.msra.mxu0 0.0
        %1465 = vmatprep.subr.mxu0 0.0
        %1466 = vmatpush1.msra.mxu0 0.0
        %1467 = vmatprep.subr.mxu0 0.0
        %1468 = vmatpush1.msra.mxu0 0.0
        %1469 = vmatprep.subr.mxu0 0.0
        %1470 = vmatpush1.msra.mxu0 0.0
        %1471 = vmatprep.subr.mxu0 0.0
        %1472 = vmatpush1.msra.mxu0 0.0
        %1473 = vmatprep.subr.mxu0 0.0
        %1474 = vmatpush1.msra.mxu0 0.0
        %1475 = vmatprep.subr.mxu0 0.0
        %1476 = vmatpush1.msra.mxu0 0.0
        %1477 = vmatprep.subr.mxu0 0.0
        %1478 = vmatpush1.msra.mxu0 0.0
        %1479 = vmatprep.subr.mxu0 0.0
        %1480 = vmatpush1.msra.mxu0 0.0
        %1481 = vmatprep.subr.mxu0 0.0
        %1482 = vmatpush1.msra.mxu0 0.0
        %1483 = vmatprep.subr.mxu0 0.0
        %1484 = vmatpush1.msra.mxu0 0.0
        %1485 = vmatprep.subr.mxu0 0.0
        %1486 = vmatpush1.msra.mxu0 0.0
        %1487 = vmatprep.subr.mxu0 0.0
        %1488 = vmatpush1.msra.mxu0 0.0
        %1489 = vmatprep.subr.mxu0 0.0
        %1490 = vmatpush1.msra.mxu0 0.0
        %1491 = vmatprep.subr.mxu0 0.0
        %1492 = vmatpush1.msra.mxu0 0.0
        %1493 = vmatprep.subr.mxu0 0.0
        %1494 = vmatpush1.msra.mxu0 0.0
        %1495 = vmatprep.subr.mxu0 0.0
        %1496 = vmatpush1.msra.mxu0 0.0
        %1497 = vmatprep.subr.mxu0 0.0
        %1498 = vmatpush1.msra.mxu0 0.0
        %1499 = vmatprep.subr.mxu0 0.0
        %1500 = vmatpush1.msra.mxu0 0.0
        %1501 = vmatprep.subr.mxu0 0.0
        %1502 = vmatpush1.msra.mxu0 0.0
        %1503 = vmatprep.subr.mxu0 0.0
        %1504 = vmatpush1.msra.mxu0 0.0
        %1505 = vmatprep.subr.mxu0 0.0
        %1506 = vmatpush1.msra.mxu0 0.0
        %1507 = vmatprep.subr.mxu0 0.0
        %1508 = vmatpush1.msra.mxu0 0.0
        %1509 = vmatprep.mubr.f32.mxu0 0.0
        %1510 = vmatmul.mubr.f32.gmra.mrb[0].mxu0 %v1212
        %v1511 = vpop.f32.mrb[0].mxu0
        %v1512 = vadd.f32 0.0, %v1511
        %v1513 = vpop.f32.mrb[0].mxu0
        %1514 = vdwg.mxu0
        %v1515 = vsub.f32 %v1444, %v1512
        %s1516 = scalar_lea.vmem %s2, 32
        %v1517 = vld [vmem:[%s1516] sm:$0xff]
        %v1518 = vld [vmem:[%s1516 + $0x8] sm:$0xff]
        %v1519 = vld [vmem:[%s1516 + $0x10] sm:$0xff]
        %v1520 = vld [vmem:[%s1516 + $0x18] sm:$0xff]
        %s1521 = scalar_lea.vmem %s3, 1
        %v1522 = vld [vmem:[%s1521] sm:$0x1]
        %v1524 = vlaneseq
        %v1525 = vshrl.u32 %v1524, 7
        %v1526 = vsub.s32 0, %v1525
        %v1527 = vrot.slane %v1522, %v1526
        %v1530 = vsel %vm697, %v1515, 0
        %1532 = vmatprep.subr.mxu0 0.0
        %1533 = vmatpush1.msra.mxu0 %v1517
        %1534 = vmatprep.subr.mxu0 0.0
        %1535 = vmatpush1.msra.mxu0 %v1518
        %1536 = vmatprep.subr.mxu0 0.0
        %1537 = vmatpush1.msra.mxu0 %v1519
        %1538 = vmatprep.subr.mxu0 0.0
        %1539 = vmatpush1.msra.mxu0 %v1520
        %1540 = vmatprep.subr.mxu0 0.0
        %1541 = vmatpush1.msra.mxu0 0.0
        %1542 = vmatprep.subr.mxu0 0.0
        %1543 = vmatpush1.msra.mxu0 0.0
        %1544 = vmatprep.subr.mxu0 0.0
        %1545 = vmatpush1.msra.mxu0 0.0
        %1546 = vmatprep.subr.mxu0 0.0
        %1547 = vmatpush1.msra.mxu0 0.0
        %1548 = vmatprep.subr.mxu0 0.0
        %1549 = vmatpush1.msra.mxu0 0.0
        %1550 = vmatprep.subr.mxu0 0.0
        %1551 = vmatpush1.msra.mxu0 0.0
        %1552 = vmatprep.subr.mxu0 0.0
        %1553 = vmatpush1.msra.mxu0 0.0
        %1554 = vmatprep.subr.mxu0 0.0
        %1555 = vmatpush1.msra.mxu0 0.0
        %1556 = vmatprep.subr.mxu0 0.0
        %1557 = vmatpush1.msra.mxu0 0.0
        %1558 = vmatprep.subr.mxu0 0.0
        %1559 = vmatpush1.msra.mxu0 0.0
        %1560 = vmatprep.subr.mxu0 0.0
        %1561 = vmatpush1.msra.mxu0 0.0
        %1562 = vmatprep.subr.mxu0 0.0
        %1563 = vmatpush1.msra.mxu0 0.0
        %1564 = vmatprep.subr.mxu0 0.0
        %1565 = vmatpush1.msra.mxu0 0.0
        %1566 = vmatprep.subr.mxu0 0.0
        %1567 = vmatpush1.msra.mxu0 0.0
        %1568 = vmatprep.subr.mxu0 0.0
        %1569 = vmatpush1.msra.mxu0 0.0
        %1570 = vmatprep.subr.mxu0 0.0
        %1571 = vmatpush1.msra.mxu0 0.0
        %1572 = vmatprep.subr.mxu0 0.0
        %1573 = vmatpush1.msra.mxu0 0.0
        %1574 = vmatprep.subr.mxu0 0.0
        %1575 = vmatpush1.msra.mxu0 0.0
        %1576 = vmatprep.subr.mxu0 0.0
        %1577 = vmatpush1.msra.mxu0 0.0
        %1578 = vmatprep.subr.mxu0 0.0
        %1579 = vmatpush1.msra.mxu0 0.0
        %1580 = vmatprep.subr.mxu0 0.0
        %1581 = vmatpush1.msra.mxu0 0.0
        %1582 = vmatprep.subr.mxu0 0.0
        %1583 = vmatpush1.msra.mxu0 0.0
        %1584 = vmatprep.subr.mxu0 0.0
        %1585 = vmatpush1.msra.mxu0 0.0
        %1586 = vmatprep.subr.mxu0 0.0
        %1587 = vmatpush1.msra.mxu0 0.0
        %1588 = vmatprep.subr.mxu0 0.0
        %1589 = vmatpush1.msra.mxu0 0.0
        %1590 = vmatprep.subr.mxu0 0.0
        %1591 = vmatpush1.msra.mxu0 0.0
        %1592 = vmatprep.subr.mxu0 0.0
        %1593 = vmatpush1.msra.mxu0 0.0
        %1594 = vmatprep.subr.mxu0 0.0
        %1595 = vmatpush1.msra.mxu0 0.0
        %1596 = vmatprep.mubr.f32.mxu0 0.0
        %1597 = vmatmul.mubr.f32.gmra.mrb[0].mxu0 %v1530
        %v1598 = vpop.f32.mrb[0].mxu0
        %v1599 = vadd.f32 %v1527, %v1598
        %v1600 = vpop.f32.mrb[0].mxu0
        %1601 = vdwg.mxu0
        %1603 = vrot.lane.b32.xlu0 %v1599, 96
        %v1604 = vpop.permute.xlu0 %1603
        %v1605 = vsel %vm697, %v1599, 0
        %v1607 = vsel %vm697, %v1604, 0
        %1609 = vmatprep.subr.mxu0 0.0
        %1610 = vmatpush1.xpose.msra.mxu0 %v1607
        %1611 = vmatprep.subr.mxu0 0.0
        %1612 = vmatpush1.xpose.msra.mxu0 0.0
        %1613 = vmatprep.subr.mxu0 0.0
        %1614 = vmatpush1.xpose.msra.mxu0 0.0
        %1615 = vmatprep.subr.mxu0 0.0
        %1616 = vmatpush1.xpose.msra.mxu0 0.0
        %1617 = vmatprep.subr.mxu0 0.0
        %1618 = vmatpush1.xpose.msra.mxu0 0.0
        %1619 = vmatprep.subr.mxu0 0.0
        %1620 = vmatpush1.xpose.msra.mxu0 0.0
        %1621 = vmatprep.subr.mxu0 0.0
        %1622 = vmatpush1.xpose.msra.mxu0 0.0
        %1623 = vmatprep.subr.mxu0 0.0
        %1624 = vmatpush1.xpose.msra.mxu0 0.0
        %1625 = vmatprep.subr.mxu0 0.0
        %1626 = vmatpush1.xpose.msra.mxu0 0.0
        %1627 = vmatprep.subr.mxu0 0.0
        %1628 = vmatpush1.xpose.msra.mxu0 0.0
        %1629 = vmatprep.subr.mxu0 0.0
        %1630 = vmatpush1.xpose.msra.mxu0 0.0
        %1631 = vmatprep.subr.mxu0 0.0
        %1632 = vmatpush1.xpose.msra.mxu0 0.0
        %1633 = vmatprep.subr.mxu0 0.0
        %1634 = vmatpush1.xpose.msra.mxu0 0.0
        %1635 = vmatprep.subr.mxu0 0.0
        %1636 = vmatpush1.xpose.msra.mxu0 0.0
        %1637 = vmatprep.subr.mxu0 0.0
        %1638 = vmatpush1.xpose.msra.mxu0 0.0
        %1639 = vmatprep.subr.mxu0 0.0
        %1640 = vmatpush1.xpose.msra.mxu0 0.0
        %1641 = vmatprep.subr.mxu0 0.0
        %1642 = vmatpush1.xpose.msra.mxu0 0.0
        %1643 = vmatprep.subr.mxu0 0.0
        %1644 = vmatpush1.xpose.msra.mxu0 0.0
        %1645 = vmatprep.subr.mxu0 0.0
        %1646 = vmatpush1.xpose.msra.mxu0 0.0
        %1647 = vmatprep.subr.mxu0 0.0
        %1648 = vmatpush1.xpose.msra.mxu0 0.0
        %1649 = vmatprep.subr.mxu0 0.0
        %1650 = vmatpush1.xpose.msra.mxu0 0.0
        %1651 = vmatprep.subr.mxu0 0.0
        %1652 = vmatpush1.xpose.msra.mxu0 0.0
        %1653 = vmatprep.subr.mxu0 0.0
        %1654 = vmatpush1.xpose.msra.mxu0 0.0
        %1655 = vmatprep.subr.mxu0 0.0
        %1656 = vmatpush1.xpose.msra.mxu0 0.0
        %1657 = vmatprep.subr.mxu0 0.0
        %1658 = vmatpush1.xpose.msra.mxu0 0.0
        %1659 = vmatprep.subr.mxu0 0.0
        %1660 = vmatpush1.xpose.msra.mxu0 0.0
        %1661 = vmatprep.subr.mxu0 0.0
        %1662 = vmatpush1.xpose.msra.mxu0 0.0
        %1663 = vmatprep.subr.mxu0 0.0
        %1664 = vmatpush1.xpose.msra.mxu0 0.0
        %1665 = vmatprep.subr.mxu0 0.0
        %1666 = vmatpush1.xpose.msra.mxu0 0.0
        %1667 = vmatprep.subr.mxu0 0.0
        %1668 = vmatpush1.xpose.msra.mxu0 0.0
        %1669 = vmatprep.subr.mxu0 0.0
        %1670 = vmatpush1.xpose.msra.mxu0 0.0
        %1671 = vmatprep.subr.mxu0 0.0
        %1672 = vmatpush1.xpose.msra.mxu0 0.0
        %1673 = vmatprep.mubr.f32.mxu0 0.0
        %1674 = vmatmul.mubr.f32.gmra.mrb[0].mxu0 %v1605
        %v1675 = vpop.f32.mrb[0].mxu0
        %v1676 = vadd.f32 0.0, %v1675
        %v1677 = vpop.f32.mrb[0].mxu0
        %1678 = vdwg.mxu0
        %v1680 = vrot.slane %v1676, 1
        %1681 = vrot.lane.b32.xlu0 %v1680, 8
        %v1682 = vpop.permute.xlu0 %1681
        %v1684 = vrot.slane %v1676, 2
        %1685 = vrot.lane.b32.xlu0 %v1684, 16
        %v1686 = vpop.permute.xlu0 %1685
        %v1688 = vrot.slane %v1676, 3
        %1689 = vrot.lane.b32.xlu0 %v1688, 24
        %v1690 = vpop.permute.xlu0 %1689
        %v1692 = vrot.slane %v1676, 4
        %1693 = vrot.lane.b32.xlu0 %v1692, 32
        %v1694 = vpop.permute.xlu0 %1693
        %v1696 = vrot.slane %v1676, 5
        %1697 = vrot.lane.b32.xlu0 %v1696, 40
        %v1698 = vpop.permute.xlu0 %1697
        %v1700 = vrot.slane %v1676, 6
        %1701 = vrot.lane.b32.xlu0 %v1700, 48
        %v1702 = vpop.permute.xlu0 %1701
        %v1704 = vrot.slane %v1676, 7
        %1705 = vrot.lane.b32.xlu0 %v1704, 56
        %v1706 = vpop.permute.xlu0 %1705
        %v1708 = vsel %vm438, %v1676, %v1682
        %v1709 = vsel %vm603, %v1708, %v1686
        %v1710 = vsel %vm879, %v1709, %v1690
        %v1711 = vsel %vm697, %v1710, %v1694
        %v1712 = vsel %vm882, %v1711, %v1698
        %v1713 = vsel %vm884, %v1712, %v1702
        %v1714 = vsel %vm886, %v1713, %v1706
        %v1716 = vsel %vm888, %v1714, 0
        %1718 = vmatprep.subr.mxu0 0.0
        %1719 = vmatpush1.msra.mxu0 %v678
        %1720 = vmatprep.subr.mxu0 0.0
        %1721 = vmatpush1.msra.mxu0 %v679
        %1722 = vmatprep.subr.mxu0 0.0
        %1723 = vmatpush1.msra.mxu0 %v680
        %1724 = vmatprep.subr.mxu0 0.0
        %1725 = vmatpush1.msra.mxu0 %v681
        %1726 = vmatprep.subr.mxu0 0.0
        %1727 = vmatpush1.msra.mxu0 %v682
        %1728 = vmatprep.subr.mxu0 0.0
        %1729 = vmatpush1.msra.mxu0 %v683
        %1730 = vmatprep.subr.mxu0 0.0
        %1731 = vmatpush1.msra.mxu0 %v684
        %1732 = vmatprep.subr.mxu0 0.0
        %1733 = vmatpush1.msra.mxu0 %v685
        %1734 = vmatprep.subr.mxu0 0.0
        %1735 = vmatpush1.msra.mxu0 0.0
        %1736 = vmatprep.subr.mxu0 0.0
        %1737 = vmatpush1.msra.mxu0 0.0
        %1738 = vmatprep.subr.mxu0 0.0
        %1739 = vmatpush1.msra.mxu0 0.0
        %1740 = vmatprep.subr.mxu0 0.0
        %1741 = vmatpush1.msra.mxu0 0.0
        %1742 = vmatprep.subr.mxu0 0.0
        %1743 = vmatpush1.msra.mxu0 0.0
        %1744 = vmatprep.subr.mxu0 0.0
        %1745 = vmatpush1.msra.mxu0 0.0
        %1746 = vmatprep.subr.mxu0 0.0
        %1747 = vmatpush1.msra.mxu0 0.0
        %1748 = vmatprep.subr.mxu0 0.0
        %1749 = vmatpush1.msra.mxu0 0.0
        %1750 = vmatprep.subr.mxu0 0.0
        %1751 = vmatpush1.msra.mxu0 0.0
        %1752 = vmatprep.subr.mxu0 0.0
        %1753 = vmatpush1.msra.mxu0 0.0
        %1754 = vmatprep.subr.mxu0 0.0
        %1755 = vmatpush1.msra.mxu0 0.0
        %1756 = vmatprep.subr.mxu0 0.0
        %1757 = vmatpush1.msra.mxu0 0.0
        %1758 = vmatprep.subr.mxu0 0.0
        %1759 = vmatpush1.msra.mxu0 0.0
        %1760 = vmatprep.subr.mxu0 0.0
        %1761 = vmatpush1.msra.mxu0 0.0
        %1762 = vmatprep.subr.mxu0 0.0
        %1763 = vmatpush1.msra.mxu0 0.0
        %1764 = vmatprep.subr.mxu0 0.0
        %1765 = vmatpush1.msra.mxu0 0.0
        %1766 = vmatprep.subr.mxu0 0.0
        %1767 = vmatpush1.msra.mxu0 0.0
        %1768 = vmatprep.subr.mxu0 0.0
        %1769 = vmatpush1.msra.mxu0 0.0
        %1770 = vmatprep.subr.mxu0 0.0
        %1771 = vmatpush1.msra.mxu0 0.0
        %1772 = vmatprep.subr.mxu0 0.0
        %1773 = vmatpush1.msra.mxu0 0.0
        %1774 = vmatprep.subr.mxu0 0.0
        %1775 = vmatpush1.msra.mxu0 0.0
        %1776 = vmatprep.subr.mxu0 0.0
        %1777 = vmatpush1.msra.mxu0 0.0
        %1778 = vmatprep.subr.mxu0 0.0
        %1779 = vmatpush1.msra.mxu0 0.0
        %1780 = vmatprep.subr.mxu0 0.0
        %1781 = vmatpush1.msra.mxu0 0.0
        %1782 = vmatprep.mubr.f32.mxu0 0.0
        %1783 = vmatmul.mubr.f32.gmra.mrb[0].mxu0 %v1716
        %v1784 = vpop.f32.mrb[0].mxu0
        %v1785 = vadd.f32 0.0, %v1784
        %v1786 = vpop.f32.mrb[0].mxu0
        %1787 = vdwg.mxu0
        %v1788 = vmul.f32 %v1785, 0.03125
        %v1789 = vsel %vm963, %v1788, -inf
        %1790 = vmax.xlane.f32.xlu0 %v1789
        %v1791 = vpop.xlane.xlu0 %1790
        %v1792 = vrot.slane %v1791, 4
        %v1793 = vmax.f32 %v1791, %v1792
        %v1794 = vrot.slane %v1793, 2
        %v1795 = vmax.f32 %v1793, %v1794
        %v1796 = vrot.slane %v1795, 1
        %v1797 = vmax.f32 %v1795, %v1796
        %s1798 = vtos %v1797
        %v1799 = vstv %s1798
        %vm1800 = vcmp.eq.f32.partialorder %v1788, %v1799
        %v1801 = vsel %vm1800, %v976, 8.0
        %v1802 = vsel %vm963, %v1801, inf
        %1803 = vmin.xlane.f32.xlu0 %v1802
        %v1804 = vpop.xlane.xlu0 %1803
        %v1805 = vrot.slane %v1804, 4
        %v1806 = vmin.f32 %v1804, %v1805
        %v1807 = vrot.slane %v1806, 2
        %v1808 = vmin.f32 %v1806, %v1807
        %v1809 = vrot.slane %v1808, 1
        %v1810 = vmin.f32 %v1808, %v1809
        %s1811 = vtos %v1810
        %s1812 = scvt.f32.s32.to.zero.pseudo %s1811
        %v1813 = vstv %s1812
        %vm1814 = vcmp.eq.s32.totalorder %v427, %v1813
        %v1815 = vsel %vm1814, -inf, %v1788
        %v1816 = vsel %vm963, %v1815, -inf
        %1817 = vmax.xlane.f32.xlu0 %v1816
        %v1818 = vpop.xlane.xlu0 %1817
        %v1819 = vrot.slane %v1818, 4
        %v1820 = vmax.f32 %v1818, %v1819
        %v1821 = vrot.slane %v1820, 2
        %v1822 = vmax.f32 %v1820, %v1821
        %v1823 = vrot.slane %v1822, 1
        %v1824 = vmax.f32 %v1822, %v1823
        %s1825 = vtos %v1824
        %v1826 = vstv %s1825
        %vm1827 = vcmp.eq.f32.partialorder %v1815, %v1826
        %v1828 = vsel %vm1827, %v976, 8.0
        %v1829 = vsel %vm963, %v1828, inf
        %1830 = vmin.xlane.f32.xlu0 %v1829
        %v1831 = vpop.xlane.xlu0 %1830
        %v1832 = vrot.slane %v1831, 4
        %v1833 = vmin.f32 %v1831, %v1832
        %v1834 = vrot.slane %v1833, 2
        %v1835 = vmin.f32 %v1833, %v1834
        %v1836 = vrot.slane %v1835, 1
        %v1837 = vmin.f32 %v1835, %v1836
        %s1838 = vtos %v1837
        %s1839 = scvt.f32.s32.to.zero.pseudo %s1838
        %s1840 = ssub.f32 %s1798, %s1798
        %v1841 = vstv %s1840
        %v1842 = vmul.f32 %v1841, 1.442695
        %v1843 = vpow.pop %v1842
        %s1844 = vtos %v1843
        %s1845 = ssub.f32 %s1825, %s1798
        %v1846 = vstv %s1845
        %v1847 = vmul.f32 %v1846, 1.442695
        %v1848 = vpow.pop %v1847
        %s1849 = vtos %v1848
        %s1850 = sadd.f32 %s1844, 0.0
        %s1851 = sadd.f32 %s1850, %s1849
        %v1852 = vstv %s1851
        %v1853 = vrcp.pop %v1852
        %s1854 = vtos %v1853
        %v1855 = vadd.s32 %v425, %v1813
        %v1856 = vand.u32 %v1855, 7
        %vm1857 = vcmp.eq.s32.totalorder %v427, %v1856
        %v1858 = vsel %vm1857, 1, 0
        %v1859 = vcvt.s32.f32 %v1858
        %s1860 = smul.f32 %s1844, %s1854
        %v1861 = vstv %s1860
        %v1862 = vmul.f32 %v1861, %v1859
        %v1863 = vadd.f32 %v1862, 0.0
        %v1864 = vstv %s1839
        %v1865 = vadd.s32 %v425, %v1864
        %v1866 = vand.u32 %v1865, 7
        %vm1867 = vcmp.eq.s32.totalorder %v427, %v1866
        %v1868 = vsel %vm1867, 1, 0
        %v1869 = vcvt.s32.f32 %v1868
        %s1870 = smul.f32 %s1849, %s1854
        %v1871 = vstv %s1870
        %v1872 = vmul.f32 %v1871, %v1869
        %v1873 = vadd.f32 %v1863, %v1872
        %1874 = vrot.lane.b32.xlu0 %v1599, 64
        %v1875 = vpop.permute.xlu0 %1874
        %v1878 = vsel %vm438, %v1873, 0
        %1880 = vmatprep.subr.mxu0 0.0
        %1881 = vmatpush1.msra.mxu0 %v1875
        %1882 = vmatprep.subr.mxu0 0.0
        %1883 = vmatpush1.msra.mxu0 0.0
        %1884 = vmatprep.subr.mxu0 0.0
        %1885 = vmatpush1.msra.mxu0 0.0
        %1886 = vmatprep.subr.mxu0 0.0
        %1887 = vmatpush1.msra.mxu0 0.0
        %1888 = vmatprep.subr.mxu0 0.0
        %1889 = vmatpush1.msra.mxu0 0.0
        %1890 = vmatprep.subr.mxu0 0.0
        %1891 = vmatpush1.msra.mxu0 0.0
        %1892 = vmatprep.subr.mxu0 0.0
        %1893 = vmatpush1.msra.mxu0 0.0
        %1894 = vmatprep.subr.mxu0 0.0
        %1895 = vmatpush1.msra.mxu0 0.0
        %1896 = vmatprep.subr.mxu0 0.0
        %1897 = vmatpush1.msra.mxu0 0.0
        %1898 = vmatprep.subr.mxu0 0.0
        %1899 = vmatpush1.msra.mxu0 0.0
        %1900 = vmatprep.subr.mxu0 0.0
        %1901 = vmatpush1.msra.mxu0 0.0
        %1902 = vmatprep.subr.mxu0 0.0
        %1903 = vmatpush1.msra.mxu0 0.0
        %1904 = vmatprep.subr.mxu0 0.0
        %1905 = vmatpush1.msra.mxu0 0.0
        %1906 = vmatprep.subr.mxu0 0.0
        %1907 = vmatpush1.msra.mxu0 0.0
        %1908 = vmatprep.subr.mxu0 0.0
        %1909 = vmatpush1.msra.mxu0 0.0
        %1910 = vmatprep.subr.mxu0 0.0
        %1911 = vmatpush1.msra.mxu0 0.0
        %1912 = vmatprep.subr.mxu0 0.0
        %1913 = vmatpush1.msra.mxu0 0.0
        %1914 = vmatprep.subr.mxu0 0.0
        %1915 = vmatpush1.msra.mxu0 0.0
        %1916 = vmatprep.subr.mxu0 0.0
        %1917 = vmatpush1.msra.mxu0 0.0
        %1918 = vmatprep.subr.mxu0 0.0
        %1919 = vmatpush1.msra.mxu0 0.0
        %1920 = vmatprep.subr.mxu0 0.0
        %1921 = vmatpush1.msra.mxu0 0.0
        %1922 = vmatprep.subr.mxu0 0.0
        %1923 = vmatpush1.msra.mxu0 0.0
        %1924 = vmatprep.subr.mxu0 0.0
        %1925 = vmatpush1.msra.mxu0 0.0
        %1926 = vmatprep.subr.mxu0 0.0
        %1927 = vmatpush1.msra.mxu0 0.0
        %1928 = vmatprep.subr.mxu0 0.0
        %1929 = vmatpush1.msra.mxu0 0.0
        %1930 = vmatprep.subr.mxu0 0.0
        %1931 = vmatpush1.msra.mxu0 0.0
        %1932 = vmatprep.subr.mxu0 0.0
        %1933 = vmatpush1.msra.mxu0 0.0
        %1934 = vmatprep.subr.mxu0 0.0
        %1935 = vmatpush1.msra.mxu0 0.0
        %1936 = vmatprep.subr.mxu0 0.0
        %1937 = vmatpush1.msra.mxu0 0.0
        %1938 = vmatprep.subr.mxu0 0.0
        %1939 = vmatpush1.msra.mxu0 0.0
        %1940 = vmatprep.subr.mxu0 0.0
        %1941 = vmatpush1.msra.mxu0 0.0
        %1942 = vmatprep.subr.mxu0 0.0
        %1943 = vmatpush1.msra.mxu0 0.0
        %1944 = vmatprep.mubr.f32.mxu0 0.0
        %1945 = vmatmul.mubr.f32.gmra.mrb[0].mxu0 %v1878
        %v1946 = vpop.f32.mrb[0].mxu0
        %v1947 = vadd.f32 0.0, %v1946
        %v1948 = vpop.f32.mrb[0].mxu0
        %1949 = vdwg.mxu0
        %s1950 = scalar_lea.vmem %s4, 32
        %v1951 = vld [vmem:[%s1950] sm:$0xff]
        %v1952 = vld [vmem:[%s1950 + $0x8] sm:$0xff]
        %v1953 = vld [vmem:[%s1950 + $0x10] sm:$0xff]
        %v1954 = vld [vmem:[%s1950 + $0x18] sm:$0xff]
        %s1955 = scalar_lea.vmem [#allocation2], 1
        %v1956 = vld [vmem:[%s1955] sm:$0x1]
        %v1958 = vlaneseq
        %v1959 = vshrl.u32 %v1958, 7
        %v1960 = vsub.s32 0, %v1959
        %v1961 = vrot.slane %v1956, %v1960
        %v1964 = vsel %vm697, %v1947, 0
        %1966 = vmatprep.subr.mxu0 0.0
        %1967 = vmatpush1.msra.mxu0 %v1951
        %1968 = vmatprep.subr.mxu0 0.0
        %1969 = vmatpush1.msra.mxu0 %v1952
        %1970 = vmatprep.subr.mxu0 0.0
        %1971 = vmatpush1.msra.mxu0 %v1953
        %1972 = vmatprep.subr.mxu0 0.0
        %1973 = vmatpush1.msra.mxu0 %v1954
        %1974 = vmatprep.subr.mxu0 0.0
        %1975 = vmatpush1.msra.mxu0 0.0
        %1976 = vmatprep.subr.mxu0 0.0
        %1977 = vmatpush1.msra.mxu0 0.0
        %1978 = vmatprep.subr.mxu0 0.0
        %1979 = vmatpush1.msra.mxu0 0.0
        %1980 = vmatprep.subr.mxu0 0.0
        %1981 = vmatpush1.msra.mxu0 0.0
        %1982 = vmatprep.subr.mxu0 0.0
        %1983 = vmatpush1.msra.mxu0 0.0
        %1984 = vmatprep.subr.mxu0 0.0
        %1985 = vmatpush1.msra.mxu0 0.0
        %1986 = vmatprep.subr.mxu0 0.0
        %1987 = vmatpush1.msra.mxu0 0.0
        %1988 = vmatprep.subr.mxu0 0.0
        %1989 = vmatpush1.msra.mxu0 0.0
        %1990 = vmatprep.subr.mxu0 0.0
        %1991 = vmatpush1.msra.mxu0 0.0
        %1992 = vmatprep.subr.mxu0 0.0
        %1993 = vmatpush1.msra.mxu0 0.0
        %1994 = vmatprep.subr.mxu0 0.0
        %1995 = vmatpush1.msra.mxu0 0.0
        %1996 = vmatprep.subr.mxu0 0.0
        %1997 = vmatpush1.msra.mxu0 0.0
        %1998 = vmatprep.subr.mxu0 0.0
        %1999 = vmatpush1.msra.mxu0 0.0
        %2000 = vmatprep.subr.mxu0 0.0
        %2001 = vmatpush1.msra.mxu0 0.0
        %2002 = vmatprep.subr.mxu0 0.0
        %2003 = vmatpush1.msra.mxu0 0.0
        %2004 = vmatprep.subr.mxu0 0.0
        %2005 = vmatpush1.msra.mxu0 0.0
        %2006 = vmatprep.subr.mxu0 0.0
        %2007 = vmatpush1.msra.mxu0 0.0
        %2008 = vmatprep.subr.mxu0 0.0
        %2009 = vmatpush1.msra.mxu0 0.0
        %2010 = vmatprep.subr.mxu0 0.0
        %2011 = vmatpush1.msra.mxu0 0.0
        %2012 = vmatprep.subr.mxu0 0.0
        %2013 = vmatpush1.msra.mxu0 0.0
        %2014 = vmatprep.subr.mxu0 0.0
        %2015 = vmatpush1.msra.mxu0 0.0
        %2016 = vmatprep.subr.mxu0 0.0
        %2017 = vmatpush1.msra.mxu0 0.0
        %2018 = vmatprep.subr.mxu0 0.0
        %2019 = vmatpush1.msra.mxu0 0.0
        %2020 = vmatprep.subr.mxu0 0.0
        %2021 = vmatpush1.msra.mxu0 0.0
        %2022 = vmatprep.subr.mxu0 0.0
        %2023 = vmatpush1.msra.mxu0 0.0
        %2024 = vmatprep.subr.mxu0 0.0
        %2025 = vmatpush1.msra.mxu0 0.0
        %2026 = vmatprep.subr.mxu0 0.0
        %2027 = vmatpush1.msra.mxu0 0.0
        %2028 = vmatprep.subr.mxu0 0.0
        %2029 = vmatpush1.msra.mxu0 0.0
        %2030 = vmatprep.mubr.f32.mxu0 0.0
        %2031 = vmatmul.mubr.f32.gmra.mrb[0].mxu0 %v1964
        %v2032 = vpop.f32.mrb[0].mxu0
        %v2033 = vadd.f32 %v1961, %v2032
        %v2034 = vpop.f32.mrb[0].mxu0
        %2035 = vdwg.mxu0
        %v2036 = vadd.f32 %v1515, %v2033
        %2037 = vmatprep.subr.mxu0 0.0
        %2038 = vmatpush1.msra.mxu0 %v2036
        %2039 = vmatprep.subr.mxu0 0.0
        %2040 = vmatpush1.msra.mxu0 0.0
        %2041 = vmatprep.subr.mxu0 0.0
        %2042 = vmatpush1.msra.mxu0 0.0
        %2043 = vmatprep.subr.mxu0 0.0
        %2044 = vmatpush1.msra.mxu0 0.0
        %2045 = vmatprep.subr.mxu0 0.0
        %2046 = vmatpush1.msra.mxu0 0.0
        %2047 = vmatprep.subr.mxu0 0.0
        %2048 = vmatpush1.msra.mxu0 0.0
        %2049 = vmatprep.subr.mxu0 0.0
        %2050 = vmatpush1.msra.mxu0 0.0
        %2051 = vmatprep.subr.mxu0 0.0
        %2052 = vmatpush1.msra.mxu0 0.0
        %2053 = vmatprep.subr.mxu0 0.0
        %2054 = vmatpush1.msra.mxu0 0.0
        %2055 = vmatprep.subr.mxu0 0.0
        %2056 = vmatpush1.msra.mxu0 0.0
        %2057 = vmatprep.subr.mxu0 0.0
        %2058 = vmatpush1.msra.mxu0 0.0
        %2059 = vmatprep.subr.mxu0 0.0
        %2060 = vmatpush1.msra.mxu0 0.0
        %2061 = vmatprep.subr.mxu0 0.0
        %2062 = vmatpush1.msra.mxu0 0.0
        %2063 = vmatprep.subr.mxu0 0.0
        %2064 = vmatpush1.msra.mxu0 0.0
        %2065 = vmatprep.subr.mxu0 0.0
        %2066 = vmatpush1.msra.mxu0 0.0
        %2067 = vmatprep.subr.mxu0 0.0
        %2068 = vmatpush1.msra.mxu0 0.0
        %2069 = vmatprep.subr.mxu0 0.0
        %2070 = vmatpush1.msra.mxu0 0.0
        %2071 = vmatprep.subr.mxu0 0.0
        %2072 = vmatpush1.msra.mxu0 0.0
        %2073 = vmatprep.subr.mxu0 0.0
        %2074 = vmatpush1.msra.mxu0 0.0
        %2075 = vmatprep.subr.mxu0 0.0
        %2076 = vmatpush1.msra.mxu0 0.0
        %2077 = vmatprep.subr.mxu0 0.0
        %2078 = vmatpush1.msra.mxu0 0.0
        %2079 = vmatprep.subr.mxu0 0.0
        %2080 = vmatpush1.msra.mxu0 0.0
        %2081 = vmatprep.subr.mxu0 0.0
        %2082 = vmatpush1.msra.mxu0 0.0
        %2083 = vmatprep.subr.mxu0 0.0
        %2084 = vmatpush1.msra.mxu0 0.0
        %2085 = vmatprep.subr.mxu0 0.0
        %2086 = vmatpush1.msra.mxu0 0.0
        %2087 = vmatprep.subr.mxu0 0.0
        %2088 = vmatpush1.msra.mxu0 0.0
        %2089 = vmatprep.subr.mxu0 0.0
        %2090 = vmatpush1.msra.mxu0 0.0
        %2091 = vmatprep.subr.mxu0 0.0
        %2092 = vmatpush1.msra.mxu0 0.0
        %2093 = vmatprep.subr.mxu0 0.0
        %2094 = vmatpush1.msra.mxu0 0.0
        %2095 = vmatprep.subr.mxu0 0.0
        %2096 = vmatpush1.msra.mxu0 0.0
        %2097 = vmatprep.subr.mxu0 0.0
        %2098 = vmatpush1.msra.mxu0 0.0
        %2099 = vmatprep.subr.mxu0 0.0
        %2100 = vmatpush1.msra.mxu0 0.0
        %2101 = vmatprep.mubr.f32.mxu0 0.0
        %2102 = vmatmul.mubr.f32.gmra.mrb[0].mxu0 %v1212
        %v2103 = vpop.f32.mrb[0].mxu0
        %v2104 = vadd.f32 0.0, %v2103
        %v2105 = vpop.f32.mrb[0].mxu0
        %2106 = vdwg.mxu0
        %v2107 = vsub.f32 %v2036, %v2104
        %s2108 = scalar_lea.vmem %s6, 32
        %v2109 = vld [vmem:[%s2108] sm:$0xff]
        %v2110 = vld [vmem:[%s2108 + $0x8] sm:$0xff]
        %v2111 = vld [vmem:[%s2108 + $0x10] sm:$0xff]
        %v2112 = vld [vmem:[%s2108 + $0x18] sm:$0xff]
        %v2114 = vsel %vm697, %v2107, 0
        %2116 = vmatprep.subr.mxu0 0.0
        %2117 = vmatpush1.msra.mxu0 %v2109
        %2118 = vmatprep.subr.mxu0 0.0
        %2119 = vmatpush1.msra.mxu0 %v2110
        %2120 = vmatprep.subr.mxu0 0.0
        %2121 = vmatpush1.msra.mxu0 %v2111
        %2122 = vmatprep.subr.mxu0 0.0
        %2123 = vmatpush1.msra.mxu0 %v2112
        %2124 = vmatprep.subr.mxu0 0.0
        %2125 = vmatpush1.msra.mxu0 0.0
        %2126 = vmatprep.subr.mxu0 0.0
        %2127 = vmatpush1.msra.mxu0 0.0
        %2128 = vmatprep.subr.mxu0 0.0
        %2129 = vmatpush1.msra.mxu0 0.0
        %2130 = vmatprep.subr.mxu0 0.0
        %2131 = vmatpush1.msra.mxu0 0.0
        %2132 = vmatprep.subr.mxu0 0.0
        %2133 = vmatpush1.msra.mxu0 0.0
        %2134 = vmatprep.subr.mxu0 0.0
        %2135 = vmatpush1.msra.mxu0 0.0
        %2136 = vmatprep.subr.mxu0 0.0
        %2137 = vmatpush1.msra.mxu0 0.0
        %2138 = vmatprep.subr.mxu0 0.0
        %2139 = vmatpush1.msra.mxu0 0.0
        %2140 = vmatprep.subr.mxu0 0.0
        %2141 = vmatpush1.msra.mxu0 0.0
        %2142 = vmatprep.subr.mxu0 0.0
        %2143 = vmatpush1.msra.mxu0 0.0
        %2144 = vmatprep.subr.mxu0 0.0
        %2145 = vmatpush1.msra.mxu0 0.0
        %2146 = vmatprep.subr.mxu0 0.0
        %2147 = vmatpush1.msra.mxu0 0.0
        %2148 = vmatprep.subr.mxu0 0.0
        %2149 = vmatpush1.msra.mxu0 0.0
        %2150 = vmatprep.subr.mxu0 0.0
        %2151 = vmatpush1.msra.mxu0 0.0
        %2152 = vmatprep.subr.mxu0 0.0
        %2153 = vmatpush1.msra.mxu0 0.0
        %2154 = vmatprep.subr.mxu0 0.0
        %2155 = vmatpush1.msra.mxu0 0.0
        %2156 = vmatprep.subr.mxu0 0.0
        %2157 = vmatpush1.msra.mxu0 0.0
        %2158 = vmatprep.subr.mxu0 0.0
        %2159 = vmatpush1.msra.mxu0 0.0
        %2160 = vmatprep.subr.mxu0 0.0
        %2161 = vmatpush1.msra.mxu0 0.0
        %2162 = vmatprep.subr.mxu0 0.0
        %2163 = vmatpush1.msra.mxu0 0.0
        %2164 = vmatprep.subr.mxu0 0.0
        %2165 = vmatpush1.msra.mxu0 0.0
        %2166 = vmatprep.subr.mxu0 0.0
        %2167 = vmatpush1.msra.mxu0 0.0
        %2168 = vmatprep.subr.mxu0 0.0
        %2169 = vmatpush1.msra.mxu0 0.0
        %2170 = vmatprep.subr.mxu0 0.0
        %2171 = vmatpush1.msra.mxu0 0.0
        %2172 = vmatprep.subr.mxu0 0.0
        %2173 = vmatpush1.msra.mxu0 0.0
        %2174 = vmatprep.subr.mxu0 0.0
        %2175 = vmatpush1.msra.mxu0 0.0
        %2176 = vmatprep.subr.mxu0 0.0
        %2177 = vmatpush1.msra.mxu0 0.0
        %2178 = vmatprep.subr.mxu0 0.0
        %2179 = vmatpush1.msra.mxu0 0.0
        %2180 = vmatprep.mubr.f32.mxu0 0.0
        %2181 = vmatmul.mubr.f32.gmra.mrb[0].mxu0 %v2114
        %v2182 = vpop.f32.mrb[0].mxu0
        %v2183 = vadd.f32 0.0, %v2182
        %v2184 = vpop.f32.mrb[0].mxu0
        %2185 = vdwg.mxu0
        %v2186 = vmax.f32 %v2183, 0.0
        %s2187 = scalar_lea.vmem %s7, 64
        %v2188 = vld [vmem:[%s2187] sm:$0xff]
        %v2189 = vld [vmem:[%s2187 + $0x8] sm:$0xff]
        %v2190 = vld [vmem:[%s2187 + $0x10] sm:$0xff]
        %v2191 = vld [vmem:[%s2187 + $0x18] sm:$0xff]
        %v2192 = vld [vmem:[%s2187 + $0x20] sm:$0xff]
        %v2193 = vld [vmem:[%s2187 + $0x28] sm:$0xff]
        %v2194 = vld [vmem:[%s2187 + $0x30] sm:$0xff]
        %v2195 = vld [vmem:[%s2187 + $0x38] sm:$0xff]
        %v2197 = vsel %vm888, %v2186, 0
        %2199 = vmatprep.subr.mxu0 0.0
        %2200 = vmatpush1.msra.mxu0 %v2188
        %2201 = vmatprep.subr.mxu0 0.0
        %2202 = vmatpush1.msra.mxu0 %v2189
        %2203 = vmatprep.subr.mxu0 0.0
        %2204 = vmatpush1.msra.mxu0 %v2190
        %2205 = vmatprep.subr.mxu0 0.0
        %2206 = vmatpush1.msra.mxu0 %v2191
        %2207 = vmatprep.subr.mxu0 0.0
        %2208 = vmatpush1.msra.mxu0 %v2192
        %2209 = vmatprep.subr.mxu0 0.0
        %2210 = vmatpush1.msra.mxu0 %v2193
        %2211 = vmatprep.subr.mxu0 0.0
        %2212 = vmatpush1.msra.mxu0 %v2194
        %2213 = vmatprep.subr.mxu0 0.0
        %2214 = vmatpush1.msra.mxu0 %v2195
        %2215 = vmatprep.subr.mxu0 0.0
        %2216 = vmatpush1.msra.mxu0 0.0
        %2217 = vmatprep.subr.mxu0 0.0
        %2218 = vmatpush1.msra.mxu0 0.0
        %2219 = vmatprep.subr.mxu0 0.0
        %2220 = vmatpush1.msra.mxu0 0.0
        %2221 = vmatprep.subr.mxu0 0.0
        %2222 = vmatpush1.msra.mxu0 0.0
        %2223 = vmatprep.subr.mxu0 0.0
        %2224 = vmatpush1.msra.mxu0 0.0
        %2225 = vmatprep.subr.mxu0 0.0
        %2226 = vmatpush1.msra.mxu0 0.0
        %2227 = vmatprep.subr.mxu0 0.0
        %2228 = vmatpush1.msra.mxu0 0.0
        %2229 = vmatprep.subr.mxu0 0.0
        %2230 = vmatpush1.msra.mxu0 0.0
        %2231 = vmatprep.subr.mxu0 0.0
        %2232 = vmatpush1.msra.mxu0 0.0
        %2233 = vmatprep.subr.mxu0 0.0
        %2234 = vmatpush1.msra.mxu0 0.0
        %2235 = vmatprep.subr.mxu0 0.0
        %2236 = vmatpush1.msra.mxu0 0.0
        %2237 = vmatprep.subr.mxu0 0.0
        %2238 = vmatpush1.msra.mxu0 0.0
        %2239 = vmatprep.subr.mxu0 0.0
        %2240 = vmatpush1.msra.mxu0 0.0
        %2241 = vmatprep.subr.mxu0 0.0
        %2242 = vmatpush1.msra.mxu0 0.0
        %2243 = vmatprep.subr.mxu0 0.0
        %2244 = vmatpush1.msra.mxu0 0.0
        %2245 = vmatprep.subr.mxu0 0.0
        %2246 = vmatpush1.msra.mxu0 0.0
        %2247 = vmatprep.subr.mxu0 0.0
        %2248 = vmatpush1.msra.mxu0 0.0
        %2249 = vmatprep.subr.mxu0 0.0
        %2250 = vmatpush1.msra.mxu0 0.0
        %2251 = vmatprep.subr.mxu0 0.0
        %2252 = vmatpush1.msra.mxu0 0.0
        %2253 = vmatprep.subr.mxu0 0.0
        %2254 = vmatpush1.msra.mxu0 0.0
        %2255 = vmatprep.subr.mxu0 0.0
        %2256 = vmatpush1.msra.mxu0 0.0
        %2257 = vmatprep.subr.mxu0 0.0
        %2258 = vmatpush1.msra.mxu0 0.0
        %2259 = vmatprep.subr.mxu0 0.0
        %2260 = vmatpush1.msra.mxu0 0.0
        %2261 = vmatprep.subr.mxu0 0.0
        %2262 = vmatpush1.msra.mxu0 0.0
        %2263 = vmatprep.mubr.f32.mxu0 0.0
        %2264 = vmatmul.mubr.f32.gmra.mrb[0].mxu0 %v2197
        %v2265 = vpop.f32.mrb[0].mxu0
        %v2266 = vadd.f32 0.0, %v2265
        %v2267 = vpop.f32.mrb[0].mxu0
        %2268 = vdwg.mxu0
        %v2269 = vadd.f32 %v2107, %v2266
        %2270 = vmatprep.subr.mxu0 0.0
        %2271 = vmatpush1.msra.mxu0 %v2269
        %2272 = vmatprep.subr.mxu0 0.0
        %2273 = vmatpush1.msra.mxu0 0.0
        %2274 = vmatprep.subr.mxu0 0.0
        %2275 = vmatpush1.msra.mxu0 0.0
        %2276 = vmatprep.subr.mxu0 0.0
        %2277 = vmatpush1.msra.mxu0 0.0
        %2278 = vmatprep.subr.mxu0 0.0
        %2279 = vmatpush1.msra.mxu0 0.0
        %2280 = vmatprep.subr.mxu0 0.0
        %2281 = vmatpush1.msra.mxu0 0.0
        %2282 = vmatprep.subr.mxu0 0.0
        %2283 = vmatpush1.msra.mxu0 0.0
        %2284 = vmatprep.subr.mxu0 0.0
        %2285 = vmatpush1.msra.mxu0 0.0
        %2286 = vmatprep.subr.mxu0 0.0
        %2287 = vmatpush1.msra.mxu0 0.0
        %2288 = vmatprep.subr.mxu0 0.0
        %2289 = vmatpush1.msra.mxu0 0.0
        %2290 = vmatprep.subr.mxu0 0.0
        %2291 = vmatpush1.msra.mxu0 0.0
        %2292 = vmatprep.subr.mxu0 0.0
        %2293 = vmatpush1.msra.mxu0 0.0
        %2294 = vmatprep.subr.mxu0 0.0
        %2295 = vmatpush1.msra.mxu0 0.0
        %2296 = vmatprep.subr.mxu0 0.0
        %2297 = vmatpush1.msra.mxu0 0.0
        %2298 = vmatprep.subr.mxu0 0.0
        %2299 = vmatpush1.msra.mxu0 0.0
        %2300 = vmatprep.subr.mxu0 0.0
        %2301 = vmatpush1.msra.mxu0 0.0
        %2302 = vmatprep.subr.mxu0 0.0
        %2303 = vmatpush1.msra.mxu0 0.0
        %2304 = vmatprep.subr.mxu0 0.0
        %2305 = vmatpush1.msra.mxu0 0.0
        %2306 = vmatprep.subr.mxu0 0.0
        %2307 = vmatpush1.msra.mxu0 0.0
        %2308 = vmatprep.subr.mxu0 0.0
        %2309 = vmatpush1.msra.mxu0 0.0
        %2310 = vmatprep.subr.mxu0 0.0
        %2311 = vmatpush1.msra.mxu0 0.0
        %2312 = vmatprep.subr.mxu0 0.0
        %2313 = vmatpush1.msra.mxu0 0.0
        %2314 = vmatprep.subr.mxu0 0.0
        %2315 = vmatpush1.msra.mxu0 0.0
        %2316 = vmatprep.subr.mxu0 0.0
        %2317 = vmatpush1.msra.mxu0 0.0
        %2318 = vmatprep.subr.mxu0 0.0
        %2319 = vmatpush1.msra.mxu0 0.0
        %2320 = vmatprep.subr.mxu0 0.0
        %2321 = vmatpush1.msra.mxu0 0.0
        %2322 = vmatprep.subr.mxu0 0.0
        %2323 = vmatpush1.msra.mxu0 0.0
        %2324 = vmatprep.subr.mxu0 0.0
        %2325 = vmatpush1.msra.mxu0 0.0
        %2326 = vmatprep.subr.mxu0 0.0
        %2327 = vmatpush1.msra.mxu0 0.0
        %2328 = vmatprep.subr.mxu0 0.0
        %2329 = vmatpush1.msra.mxu0 0.0
        %2330 = vmatprep.subr.mxu0 0.0
        %2331 = vmatpush1.msra.mxu0 0.0
        %2332 = vmatprep.subr.mxu0 0.0
        %2333 = vmatpush1.msra.mxu0 0.0
        %2334 = vmatprep.mubr.f32.mxu0 0.0
        %2335 = vmatmul.mubr.f32.gmra.mrb[0].mxu0 %v1212
        %v2336 = vpop.f32.mrb[0].mxu0
        %v2337 = vadd.f32 0.0, %v2336
        %v2338 = vpop.f32.mrb[0].mxu0
        %2339 = vdwg.mxu0
        %v2340 = vsub.f32 %v2269, %v2337
        %v2341 = vsel %vm697, %v2340, 0.0
        %2342 = vadd.xlane.f32.xlu0 %v2341
        %v2343 = vpop.xlane.xlu0 %2342
        %v2344 = vrcp.pop 32.0
        %v2345 = vmul.f32 %v2343, %v2344
        %v2346 = vsub.f32 %v2340, %v2345
        %v2347 = vmul.f32 %v2346, %v2346
        %v2348 = vsel %vm697, %v2347, 0.0
        %2349 = vadd.xlane.f32.xlu0 %v2348
        %v2350 = vpop.xlane.xlu0 %2349
        %v2351 = vmul.f32 %v2350, %v2344
        %v2352 = vadd.f32 %v2351, 1e-05
        %v2353 = vrsqrt.pop %v2352
        %v2354 = vmul.f32 %v2346, %v2353
        %v2355 = vld [vmem:[%s10] sm:$0x1]
        %v2357 = vlaneseq
        %v2358 = vshrl.u32 %v2357, 7
        %v2359 = vsub.s32 0, %v2358
        %v2360 = vrot.slane %v2355, %v2359
        %v2362 = vmul.f32 %v2354, %v2360
        %v2363 = vld [vmem:[%s11] sm:$0x1]
        %v2365 = vlaneseq
        %v2366 = vshrl.u32 %v2365, 7
        %v2367 = vsub.s32 0, %v2366
        %v2368 = vrot.slane %v2363, %v2367
        %v2370 = vadd.f32 %v2362, %v2368
        %v2371 = vsel %vm697, %v2370, 0.0
        %v2372 = vrot.slane %v2371, 4
        %v2373 = vadd.f32 %v2371, %v2372
        %v2374 = vrot.slane %v2373, 2
        %v2375 = vadd.f32 %v2373, %v2374
        %v2376 = vrot.slane %v2375, 1
        %v2377 = vadd.f32 %v2375, %v2376
        %v2378 = vrcp.pop 8.0
        %v2379 = vmul.f32 %v2377, %v2378
        %v2380 = vsub.f32 %v2370, %v2379
        %vm2381 = vcmask 261127
        %2382 = vst.msk [vmem:[%s418 - $0x7] sm:$0x80] %vm2381, %v2380
        %s2383 = sand.u32 %s292, 1
        %s2384 = scalar_lea.sflag [#allocation4], %s2383
        %s2385 = sand.u32 %s292, 1
        %s2386 = scalar_lea.vmem [#allocation5], %s2385
        // Predicated region
        $region73: #{tpu_custom_call.1} parent=67 // pred_check
          %p2387 = pneg %p302
        $region74: #{tpu_custom_call.1} parent=67 // pred_check_branch
          %2389 = sbr.rel (%p2387) target = $region76
        $region75: #{tpu_custom_call.1} parent=67 // pred_region
          %s2391 = ssub.s32 16, 16
          %2392 = vsyncadd %s2384, %s2391
          %s2393 = smul.addr %s27, 16
          %s2394 = scalar_lea.hbm %s12, %s2393
          %s2396 = sshll.u32 %s2386, 4
          %s2397 = int_to_ptr.vmem [resolvable:$true] %s2396
          %2399 = dma.vmem_to_hbm [thread:$0]  %s2397, 16, %s2394, %s2384
        $region76: #{tpu_custom_call.1} parent=67 // pred_fallthru
          _
      $region68: #{tpu_custom_call.1} parent=5 // pred_fallthru
        _
      %p2400 = scmp.le.s32.totalorder 2, %s22
      // Predicated region
      $region77: #{tpu_custom_call.1} parent=5 // pred_check
        %p2401 = pneg %p2400
      $region78: #{tpu_custom_call.1} parent=5 // pred_check_branch
        %2403 = sbr.rel (%p2401) target = $region80
      $region79: #{tpu_custom_call.1} parent=5 // pred_region
        %s2404 = ssub.s32 %s22, 2
        // Predicated region
        $region81: #{tpu_custom_call.1} parent=79 // pred_check
          %p2405 = pneg %p308
        $region82: #{tpu_custom_call.1} parent=79 // pred_check_branch
          %2407 = sbr.rel (%p2405) target = $region84
        $region83: #{tpu_custom_call.1} parent=79 // pred_region
          %s2408 = sand.u32 %s293, 1
          %s2409 = scalar_lea.sflag [#allocation4], %s2408
          %s2410 = sand.u32 %s293, 1
          %s2411 = scalar_lea.vmem [#allocation5], %s2410
          %2412 = dma.done %s2409, 16
        $region84: #{tpu_custom_call.1} parent=79 // pred_fallthru
          _
      $region80: #{tpu_custom_call.1} parent=5 // pred_fallthru
        _
    $region6: #{tpu_custom_call.1} parent=1 // loop_footer
      %s26 = sadd.s32 1, %s22
    $region7: #{tpu_custom_call.1} parent=1 // loop_footer_branch
      %21 = sbr.rel target = $region3
    $region8: #{tpu_custom_call.1} parent=1 // loop_exit
      _
    %2413 = vsyncpa [#allocation3], 1
    %s2414 = scalar_lea.sflag [#allocation3], 1
    %2415 = vsyncpa %s2414, 1
    %2416 = vsyncpa [#allocation4], 1
    %s2417 = scalar_lea.sflag [#allocation4], 1
    %2418 = vsyncpa %s2417, 1

</llo_original>
